<compile_context>
chip_gen: v5e
topology: v5e:2x2
jax: 0.10.0
libtpu: 0.0.40
codegen_flags: <defaults>
</compile_context>

<pallas_src>
import math
import functools

import numpy as np
import jax
import jax.numpy as jnp
from jax.experimental import pallas as pl
from jax.experimental.pallas import tpu as pltpu


# ------------------------------------------------------------------ kernel ---

def _parkt_stack_kernel(x_ref, y_ref, fr_ref, zp_ref,
                        wq_ref, bq_ref, wk_ref, bk_ref, wv_ref, bv_ref,
                        wo_ref, bo_ref, g1_ref, be1_ref,
                        w1_ref, b1_ref, w2_ref, b2_ref, g2_ref, be2_ref,
                        o_ref, xs_ref, *, n_heads, seq_len, approx_recip):
    l = pl.program_id(1)

    # Layer 0 of each batch tile: load the (Bt*S, D) activation slab into the
    # VMEM-resident state; it stays on-chip for the whole layer stack.
    @pl.when(l == 0)
    def _():
        xs_ref[...] = x_ref[...]

    M, D = xs_ref.shape                      # M = Bt * S (batch folded into M)
    S = seq_len
    Bt = M // S
    d_k = D // n_heads
    scale = 1.0 / math.sqrt(d_k)
    cdt = wq_ref.dtype                       # matmul compute dtype (bf16 or f32)

    x = xs_ref[...]                          # (M, D) f32 layer input
    x_c = x.astype(cdt)
    y_c = y_ref[...].astype(cdt)
    # forget_rate and 1/sqrt(d_k) folded into q once (broadcast over keys/heads)
    frs = fr_ref[...] * scale                # (M, 1) f32

    rows = jax.lax.broadcasted_iota(jnp.int32, (S, S), 0)
    cols = jax.lax.broadcasted_iota(jnp.int32, (S, S), 1)
    allowed = (cols < rows)[None]            # (1, S, S) strictly-causal (mask=0)

    # Multi-head attention.  Head split lives in the host-pre-reshaped weights
    # (leading-dim indexing only); no lane slicing / concatenation of
    # activations; out-proj accumulated per head.
    attn = jnp.zeros((M, D), jnp.float32)
    for h in range(n_heads):
        qh = jnp.dot(x_c, wq_ref[0, h], preferred_element_type=jnp.float32) + bq_ref[0, h]
        kh = jnp.dot(x_c, wk_ref[0, h], preferred_element_type=jnp.float32) + bk_ref[0, h]
        vh = jnp.dot(y_c, wv_ref[0, h], preferred_element_type=jnp.float32) + bv_ref[0, h]
        qh = qh * frs                                      # fold fr & 1/sqrt(d_k)
        q3 = qh.reshape(Bt, S, d_k).astype(cdt)
        k3 = kh.reshape(Bt, S, d_k).astype(cdt)
        v3 = vh.reshape(Bt, S, d_k).astype(cdt)
        sc = jnp.einsum("bqd,bkd->bqk", q3, k3,
                        preferred_element_type=jnp.float32)  # (Bt, S, S) f32
        sc = jnp.where(allowed, sc, -1e32)
        mx = jnp.max(sc, axis=-1, keepdims=True)
        e = jnp.exp(sc - mx)
        p = e * pl.reciprocal(jnp.sum(e, axis=-1, keepdims=True),
                              approx=approx_recip)
        ctx = jnp.einsum("bqk,bkd->bqd", p.astype(cdt), v3,
                         preferred_element_type=jnp.float32)  # (Bt, S, d_k)
        attn = attn + jnp.dot(ctx.reshape(M, d_k).astype(cdt), wo_ref[0, h],
                              preferred_element_type=jnp.float32)

    # zero_pad hoisted out of the head loop: zero the pre-bias attention output
    # at every sequence's first row, then add the out_proj bias (row 0 == bo,
    # exactly as in the reference).
    attn = attn * zp_ref[...] + bo_ref[0]

    # residual + LayerNorm 1
    x1 = x + attn
    mu = jnp.mean(x1, axis=-1, keepdims=True)
    var = jnp.mean((x1 - mu) ** 2, axis=-1, keepdims=True)
    x1n = (x1 - mu) * jax.lax.rsqrt(var + 1e-5) * g1_ref[0] + be1_ref[0]

    # position-wise FFN
    hdn = jnp.dot(x1n.astype(cdt), w1_ref[0],
                  preferred_element_type=jnp.float32) + b1_ref[0]
    hdn = jnp.maximum(hdn, 0.0)
    ff = jnp.dot(hdn.astype(cdt), w2_ref[0],
                 preferred_element_type=jnp.float32) + b2_ref[0]

    # residual + LayerNorm 2
    x2 = x1n + ff
    mu2 = jnp.mean(x2, axis=-1, keepdims=True)
    var2 = jnp.mean((x2 - mu2) ** 2, axis=-1, keepdims=True)
    out = (x2 - mu2) * jax.lax.rsqrt(var2 + 1e-5) * g2_ref[0] + be2_ref[0]

    xs_ref[...] = out        # resident state for the next layer
    o_ref[...] = out         # written back to HBM when the batch tile advances


# ------------------------------------------------------------- pallas glue ---

_WEIGHT_ORDER = ("wq", "bq", "wk", "bk", "wv", "bv", "wo", "bo",
                 "g1", "be1", "w1", "b1", "w2", "b2", "g2", "be2")


def stack_block_params(blocks, n_heads, matmul_dtype=jnp.bfloat16):
    """Stack per-layer params and pre-split heads on the host (zero kernel cost)."""
    L = len(blocks)
    D = blocks[0]["wq"].shape[0]
    H = n_heads
    dk = D // H

    def stk(name):
        return jnp.stack([b[name] for b in blocks], axis=0)

    def heads_out(w):        # (L, D, D) -> (L, H, D, dk): split output features
        return w.reshape(L, D, H, dk).transpose(0, 2, 1, 3)

    def heads_bias(b):       # (L, 1, D) -> (L, H, 1, dk)
        return b.reshape(L, 1, H, dk).transpose(0, 2, 1, 3)

    return {
        "wq": heads_out(stk("wq")).astype(matmul_dtype),
        "bq": heads_bias(stk("bq")),
        "wk": heads_out(stk("wk")).astype(matmul_dtype),
        "bk": heads_bias(stk("bk")),
        "wv": heads_out(stk("wv")).astype(matmul_dtype),
        "bv": heads_bias(stk("bv")),
        # out_proj: concat-feature (input) dim split -> (L, H, dk, D)
        "wo": stk("wo").reshape(L, H, dk, D).astype(matmul_dtype),
        "bo": stk("bo"),
        "g1": stk("g1"), "be1": stk("be1"),
        "w1": stk("w1").astype(matmul_dtype), "b1": stk("b1"),
        "w2": stk("w2").astype(matmul_dtype), "b2": stk("b2"),
        "g2": stk("g2"), "be2": stk("be2"),
    }


def parkt_stack(x2d, y2d, fr2d, zp2d, stacked, *, n_heads, seq_len,
                batch_tile=None, approx_recip=True):
    BS, D = x2d.shape
    B = BS // seq_len
    L = stacked["wq"].shape[0]
    Bt = B if batch_tile is None else batch_tile
    assert B % Bt == 0, "batch_tile must divide batch"
    n_bt = B // Bt
    M = Bt * seq_len

    def act_spec():
        return pl.BlockSpec((M, D), lambda bt, l: (bt, 0))

    def vec_spec():
        return pl.BlockSpec((M, 1), lambda bt, l: (bt, 0))

    w_args, w_specs = [], []
    for name in _WEIGHT_ORDER:
        arr = stacked[name]
        per_layer = tuple(arr.shape[1:])
        nd = len(per_layer)
        w_args.append(arr)
        w_specs.append(pl.BlockSpec((1,) + per_layer,
                                    lambda bt, l, _nd=nd: (l,) + (0,) * _nd))

    in_specs = [act_spec(), act_spec(), vec_spec(), vec_spec()] + w_specs

    # Explicit VMEM budget (review): double-buffered blocks + scratch + headroom.
    def nbytes(shape, dtype):
        return int(np.prod(shape)) * jnp.dtype(dtype).itemsize

    est = 2 * (2 * nbytes((M, D), x2d.dtype) + 2 * nbytes((M, 1), x2d.dtype))
    for arr in w_args:
        est += 2 * nbytes((1,) + tuple(arr.shape[1:]), arr.dtype)
    est += 2 * nbytes((M, D), jnp.float32)      # output block
    est += nbytes((M, D), jnp.float32)          # resident activation scratch
    vmem_limit = int(min(max(2 * est + (8 << 20), 16 << 20), 64 << 20))

    kernel = functools.partial(_parkt_stack_kernel, n_heads=n_heads,
                               seq_len=seq_len, approx_recip=approx_recip)

    return pl.pallas_call(
        kernel,
        out_shape=jax.ShapeDtypeStruct((BS, D), jnp.float32),
        grid_spec=pltpu.PrefetchScalarGridSpec(
            num_scalar_prefetch=0,
            grid=(n_bt, L),                     # (batch tiles, layers)
            in_specs=in_specs,
            out_specs=pl.BlockSpec((M, D), lambda bt, l: (bt, 0)),
            scratch_shapes=[pltpu.VMEM((M, D), jnp.float32)]),
        compiler_params=pltpu.CompilerParams(
            dimension_semantics=("parallel", "arbitrary"),
            vmem_limit_bytes=vmem_limit),
    )(x2d, y2d, fr2d, zp2d, *w_args)


def cosine_positional_embedding(max_len, d_model):
    # random part of pe is fully overwritten when d_model is even
    pos = jnp.arange(max_len, dtype=jnp.float32)[:, None]
    div = jnp.exp(jnp.arange(0, d_model, 2, dtype=jnp.float32)
                  * -(math.log(10000.0) / d_model))
    pe = jnp.zeros((max_len, d_model), jnp.float32)
    pe = pe.at[:, 0::2].set(jnp.sin(pos * div))
    pe = pe.at[:, 1::2].set(jnp.cos(pos * div))
    return pe


def init_block_params(key, d_model, d_ff):
    ks = jax.random.split(key, 8)

    def xavier(k, shape):
        lim = math.sqrt(6.0 / (shape[0] + shape[1]))
        return jax.random.uniform(k, shape, jnp.float32, -lim, lim)

    return {
        "wq": xavier(ks[0], (d_model, d_model)), "bq": jnp.zeros((1, d_model)),
        "wk": xavier(ks[1], (d_model, d_model)), "bk": jnp.zeros((1, d_model)),
        "wv": xavier(ks[2], (d_model, d_model)), "bv": jnp.zeros((1, d_model)),
        "wo": xavier(ks[3], (d_model, d_model)), "bo": jnp.zeros((1, d_model)),
        "g1": jnp.ones((1, d_model)), "be1": jnp.zeros((1, d_model)),
        "w1": xavier(ks[4], (d_model, d_ff)),
        "b1": 0.01 * jax.random.normal(ks[5], (1, d_ff)),
        "w2": xavier(ks[6], (d_ff, d_model)),
        "b2": 0.01 * jax.random.normal(ks[7], (1, d_model)),
        "g2": jnp.ones((1, d_model)), "be2": jnp.zeros((1, d_model)),
    }


def architecture_forward(q_embed, qa_embed, forget_rate, blocks, pos_emb, n_heads,
                         matmul_dtype=jnp.bfloat16, batch_tile=None):
    B, S, D = q_embed.shape
    pe = pos_emb[None, :S, :]
    x2d = (q_embed + pe).reshape(B * S, D)      # q_pos_embed, batch folded into M
    y2d = (qa_embed + pe).reshape(B * S, D)     # qa_pos_embed
    fr2d = forget_rate.reshape(B * S, 1).astype(jnp.float32)
    # zero_pad keep-mask: 0 at every sequence's first position, 1 elsewhere
    zp2d = (jnp.tile(jnp.arange(S), B) != 0).astype(jnp.float32).reshape(B * S, 1)
    stacked = stack_block_params(blocks, n_heads, matmul_dtype=matmul_dtype)
    approx = bool(jnp.dtype(matmul_dtype) != jnp.dtype(jnp.float32))
    out = parkt_stack(x2d, y2d, fr2d, zp2d, stacked, n_heads=n_heads,
                      seq_len=S, batch_tile=batch_tile, approx_recip=approx)
    return out.reshape(B, S, D)


# ------------------------------------------------------------- pure-JAX ref ---

def _ln(x, g, b):
    mu = jnp.mean(x, axis=-1, keepdims=True)
    var = jnp.mean((x - mu) ** 2, axis=-1, keepdims=True)
    return (x - mu) * jax.lax.rsqrt(var + 1e-5) * g + b


def ref_layer(x, y, fr, p, n_heads):
    B, S, D = x.shape
    dk = D // n_heads
    q = x @ p["wq"] + p["bq"]
    k = x @ p["wk"] + p["bk"]
    v = y @ p["wv"] + p["bv"]
    qh = q.reshape(B, S, n_heads, dk).transpose(0, 2, 1, 3)
    kh = k.reshape(B, S, n_heads, dk).transpose(0, 2, 1, 3)
    vh = v.reshape(B, S, n_heads, dk).transpose(0, 2, 1, 3)
    sc = jnp.einsum("bhid,bhjd->bhij", qh, kh) / math.sqrt(dk)
    sc = sc * fr[:, None, :, :]
    rows = jnp.arange(S)[:, None]
    cols = jnp.arange(S)[None, :]
    sc = jnp.where(cols < rows, sc, -1e32)
    pr = jax.nn.softmax(sc, axis=-1)
    pr = jnp.where((rows == 0)[None, None], 0.0, pr)
    out = jnp.einsum("bhij,bhjd->bhid", pr, vh).transpose(0, 2, 1, 3).reshape(B, S, D)
    out = out @ p["wo"] + p["bo"]
    x1 = _ln(x + out, p["g1"], p["be1"])
    ff = jnp.maximum(x1 @ p["w1"] + p["b1"], 0.0) @ p["w2"] + p["b2"]
    return _ln(x1 + ff, p["g2"], p["be2"])


def ref_forward(q_embed, qa_embed, forget_rate, blocks, pos_emb, n_heads):
    S = q_embed.shape[1]
    pe = pos_emb[None, :S, :]
    x = q_embed + pe
    y = qa_embed + pe
    for p in blocks:
        x = ref_layer(x, y, forget_rate, p, n_heads)
    return x


# --------------------------------------------------------------------- main ---

if __name__ == "__main__":
    B, S, D, H, D_FF = 2, 8, 32, 2, 64
    N_BLOCKS, MAX_LEN = 2, 16

    key = jax.random.PRNGKey(0)
    k_q, k_qa, k_fr, k_params = jax.random.split(key, 4)

    q_embed = 0.5 * jax.random.normal(k_q, (B, S, D), jnp.float32)
    qa_embed = 0.5 * jax.random.normal(k_qa, (B, S, D), jnp.float32)
    forget_rate = jax.nn.sigmoid(jax.random.normal(k_fr, (B, S, 1), jnp.float32))

    blocks = [init_block_params(k, D, D_FF)
              for k in jax.random.split(k_params, N_BLOCKS)]
    pos_emb = cosine_positional_embedding(MAX_LEN, D)

    # Production config (per perf review) is MATMUL_DTYPE = jnp.bfloat16:
    # ~3x MXU throughput on v6e/v7x and half the weight DMA, with f32
    # accumulation and an approx EUP reciprocal in the softmax.  The demo runs
    # float32 so the result can be validated at a tight 2e-4 tolerance against
    # the f32 reference (bf16 rounding needs a ~5e-2 tolerance).
    MATMUL_DTYPE = jnp.float32

    out = architecture_forward(q_embed, qa_embed, forget_rate, blocks, pos_emb, H,
                               matmul_dtype=MATMUL_DTYPE)
    out = jax.block_until_ready(out)

    ref = jax.block_until_ready(
        ref_forward(q_embed, qa_embed, forget_rate, blocks, pos_emb, H))

    tol = 2e-4 if jnp.dtype(MATMUL_DTYPE) == jnp.dtype(jnp.float32) else 5e-2
    np.testing.assert_allclose(np.asarray(out), np.asarray(ref),
                               rtol=tol, atol=tol)
    print("KERNEL_OK")
</pallas_src>

<mosaic_0001>
module attributes {stable_mosaic.version = 11 : i64} {
  func.func @_parkt_stack_kernel(%arg0: i32, %arg1: i32, %arg2: memref<16x32xf32, #tpu.memory_space<vmem>>, %arg3: memref<16x32xf32, #tpu.memory_space<vmem>>, %arg4: memref<16x1xf32, #tpu.memory_space<vmem>>, %arg5: memref<16x1xf32, #tpu.memory_space<vmem>>, %arg6: memref<1x2x32x16xf32, #tpu.memory_space<vmem>>, %arg7: memref<1x2x1x16xf32, #tpu.memory_space<vmem>>, %arg8: memref<1x2x32x16xf32, #tpu.memory_space<vmem>>, %arg9: memref<1x2x1x16xf32, #tpu.memory_space<vmem>>, %arg10: memref<1x2x32x16xf32, #tpu.memory_space<vmem>>, %arg11: memref<1x2x1x16xf32, #tpu.memory_space<vmem>>, %arg12: memref<1x2x16x32xf32, #tpu.memory_space<vmem>>, %arg13: memref<1x1x32xf32, #tpu.memory_space<vmem>>, %arg14: memref<1x1x32xf32, #tpu.memory_space<vmem>>, %arg15: memref<1x1x32xf32, #tpu.memory_space<vmem>>, %arg16: memref<1x32x64xf32, #tpu.memory_space<vmem>>, %arg17: memref<1x1x64xf32, #tpu.memory_space<vmem>>, %arg18: memref<1x64x32xf32, #tpu.memory_space<vmem>>, %arg19: memref<1x1x32xf32, #tpu.memory_space<vmem>>, %arg20: memref<1x1x32xf32, #tpu.memory_space<vmem>>, %arg21: memref<1x1x32xf32, #tpu.memory_space<vmem>>, %arg22: memref<16x32xf32, #tpu.memory_space<vmem>>, %arg23: memref<16x32xf32, #tpu.memory_space<vmem>>) attributes {dimension_semantics = [#tpu.dimension_semantics<parallel>, #tpu.dimension_semantics<arbitrary>], iteration_bounds = array<i64: 1, 2>, scalar_prefetch = 0 : i64, scratch_operands = 1 : i64, tpu.core_type = #tpu.core_type<tc>, window_params = [{transform_indices = @transform_0, window_bounds = array<i64: 16, 32>}, {transform_indices = @transform_1, window_bounds = array<i64: 16, 32>}, {transform_indices = @transform_2, window_bounds = array<i64: 16, 1>}, {transform_indices = @transform_3, window_bounds = array<i64: 16, 1>}, {transform_indices = @transform_4, window_bounds = array<i64: 1, 2, 32, 16>}, {transform_indices = @transform_5, window_bounds = array<i64: 1, 2, 1, 16>}, {transform_indices = @transform_6, window_bounds = array<i64: 1, 2, 32, 16>}, {transform_indices = @transform_7, window_bounds = array<i64: 1, 2, 1, 16>}, {transform_indices = @transform_8, window_bounds = array<i64: 1, 2, 32, 16>}, {transform_indices = @transform_9, window_bounds = array<i64: 1, 2, 1, 16>}, {transform_indices = @transform_10, window_bounds = array<i64: 1, 2, 16, 32>}, {transform_indices = @transform_11, window_bounds = array<i64: 1, 1, 32>}, {transform_indices = @transform_12, window_bounds = array<i64: 1, 1, 32>}, {transform_indices = @transform_13, window_bounds = array<i64: 1, 1, 32>}, {transform_indices = @transform_14, window_bounds = array<i64: 1, 32, 64>}, {transform_indices = @transform_15, window_bounds = array<i64: 1, 1, 64>}, {transform_indices = @transform_16, window_bounds = array<i64: 1, 64, 32>}, {transform_indices = @transform_17, window_bounds = array<i64: 1, 1, 32>}, {transform_indices = @transform_18, window_bounds = array<i64: 1, 1, 32>}, {transform_indices = @transform_19, window_bounds = array<i64: 1, 1, 32>}, {transform_indices = @transform_20, window_bounds = array<i64: 16, 32>}]} {
    %c0_i32 = arith.constant 0 : i32
    %0 = arith.cmpi eq, %arg1, %c0_i32 : i32
    %1 = arith.extui %0 : i1 to i32
    %c0_i32_0 = arith.constant 0 : i32
    %2 = arith.cmpi ne, %1, %c0_i32_0 : i32
    scf.if %2 {
      %c0_126 = arith.constant 0 : index
      %c0_127 = arith.constant 0 : index
      %186 = vector.load %arg2[%c0_126, %c0_127] : memref<16x32xf32, #tpu.memory_space<vmem>>, vector<16x32xf32>
      %c0_128 = arith.constant 0 : index
      %c0_129 = arith.constant 0 : index
      %187 = vector.load %arg23[%c0_128, %c0_129] : memref<16x32xf32, #tpu.memory_space<vmem>>, vector<16x32xf32>
      tpu.vector_store %arg23[%c0_128, %c0_129], %186 {strides = array<i32>} : memref<16x32xf32, #tpu.memory_space<vmem>>, vector<16x32xf32>,
    } else {
    }
    %c0 = arith.constant 0 : index
    %c0_1 = arith.constant 0 : index
    %3 = vector.load %arg23[%c0, %c0_1] : memref<16x32xf32, #tpu.memory_space<vmem>>, vector<16x32xf32>
    %c0_2 = arith.constant 0 : index
    %c0_3 = arith.constant 0 : index
    %4 = vector.load %arg3[%c0_2, %c0_3] : memref<16x32xf32, #tpu.memory_space<vmem>>, vector<16x32xf32>
    %c0_4 = arith.constant 0 : index
    %c0_5 = arith.constant 0 : index
    %5 = vector.load %arg4[%c0_4, %c0_5] : memref<16x1xf32, #tpu.memory_space<vmem>>, vector<16x1xf32>
    %cst = arith.constant 2.500000e-01 : f32
    %6 = vector.broadcast %cst : f32 to vector<16x1xf32>
    %7 = arith.mulf %5, %6 : vector<16x1xf32>
    %8 = tpu.iota {dimensions = array<i32: 0>} : vector<8x8xi32>
    %9 = tpu.iota {dimensions = array<i32: 1>} : vector<8x8xi32>
    %10 = arith.cmpi slt, %9, %8 : vector<8x8xi32>
    %11 = vector.shape_cast %10 : vector<8x8xi1> to vector<1x8x8xi1>
    %cst_6 = arith.constant 0.000000e+00 : f32
    %12 = vector.broadcast %cst_6 : f32 to vector<16x32xf32>
    %c0_7 = arith.constant 0 : index
    %c0_8 = arith.constant 0 : index
    %c0_9 = arith.constant 0 : index
    %c0_10 = arith.constant 0 : index
    %13 = vector.load %arg6[%c0_7, %c0_8, %c0_9, %c0_10] : memref<1x2x32x16xf32, #tpu.memory_space<vmem>>, vector<1x1x32x16xf32>
    %14 = vector.shape_cast %13 : vector<1x1x32x16xf32> to vector<32x16xf32>
    %cst_11 = arith.constant dense<0.000000e+00> : vector<16x16xf32>
    %15 = tpu.matmul %3, %14, %cst_11 {dimension_numbers = #tpu.dot_dimension_numbers<[1], [0], [0], [1], [0, 0, 1, 1], [], []>} : vector<16x32xf32>, vector<32x16xf32>, vector<16x16xf32> -> vector<16x16xf32>
    %c0_12 = arith.constant 0 : index
    %c0_13 = arith.constant 0 : index
    %c0_14 = arith.constant 0 : index
    %c0_15 = arith.constant 0 : index
    %16 = vector.load %arg7[%c0_12, %c0_13, %c0_14, %c0_15] : memref<1x2x1x16xf32, #tpu.memory_space<vmem>>, vector<1x1x1x16xf32>
    %17 = vector.shape_cast %16 : vector<1x1x1x16xf32> to vector<1x16xf32>
    %18 = vector.broadcast %17 : vector<1x16xf32> to vector<16x16xf32>
    %19 = arith.addf %15, %18 : vector<16x16xf32>
    %c0_16 = arith.constant 0 : index
    %c0_17 = arith.constant 0 : index
    %c0_18 = arith.constant 0 : index
    %c0_19 = arith.constant 0 : index
    %20 = vector.load %arg8[%c0_16, %c0_17, %c0_18, %c0_19] : memref<1x2x32x16xf32, #tpu.memory_space<vmem>>, vector<1x1x32x16xf32>
    %21 = vector.shape_cast %20 : vector<1x1x32x16xf32> to vector<32x16xf32>
    %cst_20 = arith.constant dense<0.000000e+00> : vector<16x16xf32>
    %22 = tpu.matmul %3, %21, %cst_20 {dimension_numbers = #tpu.dot_dimension_numbers<[1], [0], [0], [1], [0, 0, 1, 1], [], []>} : vector<16x32xf32>, vector<32x16xf32>, vector<16x16xf32> -> vector<16x16xf32>
    %c0_21 = arith.constant 0 : index
    %c0_22 = arith.constant 0 : index
    %c0_23 = arith.constant 0 : index
    %c0_24 = arith.constant 0 : index
    %23 = vector.load %arg9[%c0_21, %c0_22, %c0_23, %c0_24] : memref<1x2x1x16xf32, #tpu.memory_space<vmem>>, vector<1x1x1x16xf32>
    %24 = vector.shape_cast %23 : vector<1x1x1x16xf32> to vector<1x16xf32>
    %25 = vector.broadcast %24 : vector<1x16xf32> to vector<16x16xf32>
    %26 = arith.addf %22, %25 : vector<16x16xf32>
    %c0_25 = arith.constant 0 : index
    %c0_26 = arith.constant 0 : index
    %c0_27 = arith.constant 0 : index
    %c0_28 = arith.constant 0 : index
    %27 = vector.load %arg10[%c0_25, %c0_26, %c0_27, %c0_28] : memref<1x2x32x16xf32, #tpu.memory_space<vmem>>, vector<1x1x32x16xf32>
    %28 = vector.shape_cast %27 : vector<1x1x32x16xf32> to vector<32x16xf32>
    %cst_29 = arith.constant dense<0.000000e+00> : vector<16x16xf32>
    %29 = tpu.matmul %4, %28, %cst_29 {dimension_numbers = #tpu.dot_dimension_numbers<[1], [0], [0], [1], [0, 0, 1, 1], [], []>} : vector<16x32xf32>, vector<32x16xf32>, vector<16x16xf32> -> vector<16x16xf32>
    %c0_30 = arith.constant 0 : index
    %c0_31 = arith.constant 0 : index
    %c0_32 = arith.constant 0 : index
    %c0_33 = arith.constant 0 : index
    %30 = vector.load %arg11[%c0_30, %c0_31, %c0_32, %c0_33] : memref<1x2x1x16xf32, #tpu.memory_space<vmem>>, vector<1x1x1x16xf32>
    %31 = vector.shape_cast %30 : vector<1x1x1x16xf32> to vector<1x16xf32>
    %32 = vector.broadcast %31 : vector<1x16xf32> to vector<16x16xf32>
    %33 = arith.addf %29, %32 : vector<16x16xf32>
    %34 = vector.broadcast %7 : vector<16x1xf32> to vector<16x16xf32>
    %35 = arith.mulf %19, %34 : vector<16x16xf32>
    %36 = vector.shape_cast %35 : vector<16x16xf32> to vector<2x8x16xf32>
    %37 = vector.shape_cast %26 : vector<16x16xf32> to vector<2x8x16xf32>
    %38 = vector.shape_cast %33 : vector<16x16xf32> to vector<2x8x16xf32>
    "tpu.trace_start"() <{level = 10 : i32, message = "bqd,bkd->bqk"}> : () -> ()
    %cst_34 = arith.constant dense<0.000000e+00> : vector<2x8x8xf32>
    %39 = tpu.matmul %36, %37, %cst_34 {dimension_numbers = #tpu.dot_dimension_numbers<[2], [2], [1], [1], [0, 0, 0, 1, 1, 1], [0], [0]>} : vector<2x8x16xf32>, vector<2x8x16xf32>, vector<2x8x8xf32> -> vector<2x8x8xf32>
    %cst_35 = arith.constant -1.000000e+32 : f32
    "tpu.trace_stop"() : () -> ()
    %40 = vector.shape_cast %11 : vector<1x8x8xi1> to vector<1x8x8xi1>
    %41 = vector.broadcast %40 : vector<1x8x8xi1> to vector<2x8x8xi1>
    %42 = vector.broadcast %cst_35 : f32 to vector<2x8x8xf32>
    %43 = arith.select %41, %39, %42 : vector<2x8x8xi1>, vector<2x8x8xf32>
    %cst_36 = arith.constant dense<0xFF800000> : vector<2x8xf32>
    %44 = vector.multi_reduction <maximumf>, %43, %cst_36 [2] : vector<2x8x8xf32> to vector<2x8xf32>
    %45 = vector.shape_cast %44 : vector<2x8xf32> to vector<2x8x1xf32>
    %46 = vector.broadcast %45 : vector<2x8x1xf32> to vector<2x8x8xf32>
    %47 = arith.subf %43, %46 : vector<2x8x8xf32>
    %48 = math.exp %47 : vector<2x8x8xf32>
    %cst_37 = arith.constant dense<0.000000e+00> : vector<2x8xf32>
    %49 = vector.multi_reduction <add>, %48, %cst_37 [2] : vector<2x8x8xf32> to vector<2x8xf32>
    %50 = vector.shape_cast %49 : vector<2x8xf32> to vector<2x8x1xf32>
    %51 = tpu.reciprocal %50 : vector<2x8x1xf32> -> vector<2x8x1xf32>
    %52 = vector.broadcast %51 : vector<2x8x1xf32> to vector<2x8x8xf32>
    %53 = arith.mulf %48, %52 : vector<2x8x8xf32>
    "tpu.trace_start"() <{level = 10 : i32, message = "bqk,bkd->bqd"}> : () -> ()
    %cst_38 = arith.constant dense<0.000000e+00> : vector<2x8x16xf32>
    %54 = tpu.matmul %53, %38, %cst_38 {dimension_numbers = #tpu.dot_dimension_numbers<[2], [1], [1], [2], [0, 0, 0, 1, 1, 2], [0], [0]>} : vector<2x8x8xf32>, vector<2x8x16xf32>, vector<2x8x16xf32> -> vector<2x8x16xf32>
    "tpu.trace_stop"() : () -> ()
    %55 = vector.shape_cast %54 : vector<2x8x16xf32> to vector<16x16xf32>
    %c0_39 = arith.constant 0 : index
    %c0_40 = arith.constant 0 : index
    %c0_41 = arith.constant 0 : index
    %c0_42 = arith.constant 0 : index
    %56 = vector.load %arg12[%c0_39, %c0_40, %c0_41, %c0_42] : memref<1x2x16x32xf32, #tpu.memory_space<vmem>>, vector<1x1x16x32xf32>
    %57 = vector.shape_cast %56 : vector<1x1x16x32xf32> to vector<16x32xf32>
    %cst_43 = arith.constant dense<0.000000e+00> : vector<16x32xf32>
    %58 = tpu.matmul %55, %57, %cst_43 {dimension_numbers = #tpu.dot_dimension_numbers<[1], [0], [0], [1], [0, 0, 1, 1], [], []>} : vector<16x16xf32>, vector<16x32xf32>, vector<16x32xf32> -> vector<16x32xf32>
    %59 = arith.addf %12, %58 : vector<16x32xf32>
    %c0_44 = arith.constant 0 : index
    %c1 = arith.constant 1 : index
    %c0_45 = arith.constant 0 : index
    %c0_46 = arith.constant 0 : index
    %60 = vector.load %arg6[%c0_44, %c1, %c0_45, %c0_46] : memref<1x2x32x16xf32, #tpu.memory_space<vmem>>, vector<1x1x32x16xf32>
    %61 = vector.shape_cast %60 : vector<1x1x32x16xf32> to vector<32x16xf32>
    %cst_47 = arith.constant dense<0.000000e+00> : vector<16x16xf32>
    %62 = tpu.matmul %3, %61, %cst_47 {dimension_numbers = #tpu.dot_dimension_numbers<[1], [0], [0], [1], [0, 0, 1, 1], [], []>} : vector<16x32xf32>, vector<32x16xf32>, vector<16x16xf32> -> vector<16x16xf32>
    %c0_48 = arith.constant 0 : index
    %c1_49 = arith.constant 1 : index
    %c0_50 = arith.constant 0 : index
    %c0_51 = arith.constant 0 : index
    %63 = vector.load %arg7[%c0_48, %c1_49, %c0_50, %c0_51] : memref<1x2x1x16xf32, #tpu.memory_space<vmem>>, vector<1x1x1x16xf32>
    %64 = vector.shape_cast %63 : vector<1x1x1x16xf32> to vector<1x16xf32>
    %65 = vector.broadcast %64 : vector<1x16xf32> to vector<16x16xf32>
    %66 = arith.addf %62, %65 : vector<16x16xf32>
    %c0_52 = arith.constant 0 : index
    %c1_53 = arith.constant 1 : index
    %c0_54 = arith.constant 0 : index
    %c0_55 = arith.constant 0 : index
    %67 = vector.load %arg8[%c0_52, %c1_53, %c0_54, %c0_55] : memref<1x2x32x16xf32, #tpu.memory_space<vmem>>, vector<1x1x32x16xf32>
    %68 = vector.shape_cast %67 : vector<1x1x32x16xf32> to vector<32x16xf32>
    %cst_56 = arith.constant dense<0.000000e+00> : vector<16x16xf32>
    %69 = tpu.matmul %3, %68, %cst_56 {dimension_numbers = #tpu.dot_dimension_numbers<[1], [0], [0], [1], [0, 0, 1, 1], [], []>} : vector<16x32xf32>, vector<32x16xf32>, vector<16x16xf32> -> vector<16x16xf32>
    %c0_57 = arith.constant 0 : index
    %c1_58 = arith.constant 1 : index
    %c0_59 = arith.constant 0 : index
    %c0_60 = arith.constant 0 : index
    %70 = vector.load %arg9[%c0_57, %c1_58, %c0_59, %c0_60] : memref<1x2x1x16xf32, #tpu.memory_space<vmem>>, vector<1x1x1x16xf32>
    %71 = vector.shape_cast %70 : vector<1x1x1x16xf32> to vector<1x16xf32>
    %72 = vector.broadcast %71 : vector<1x16xf32> to vector<16x16xf32>
    %73 = arith.addf %69, %72 : vector<16x16xf32>
    %c0_61 = arith.constant 0 : index
    %c1_62 = arith.constant 1 : index
    %c0_63 = arith.constant 0 : index
    %c0_64 = arith.constant 0 : index
    %74 = vector.load %arg10[%c0_61, %c1_62, %c0_63, %c0_64] : memref<1x2x32x16xf32, #tpu.memory_space<vmem>>, vector<1x1x32x16xf32>
    %75 = vector.shape_cast %74 : vector<1x1x32x16xf32> to vector<32x16xf32>
    %cst_65 = arith.constant dense<0.000000e+00> : vector<16x16xf32>
    %76 = tpu.matmul %4, %75, %cst_65 {dimension_numbers = #tpu.dot_dimension_numbers<[1], [0], [0], [1], [0, 0, 1, 1], [], []>} : vector<16x32xf32>, vector<32x16xf32>, vector<16x16xf32> -> vector<16x16xf32>
    %c0_66 = arith.constant 0 : index
    %c1_67 = arith.constant 1 : index
    %c0_68 = arith.constant 0 : index
    %c0_69 = arith.constant 0 : index
    %77 = vector.load %arg11[%c0_66, %c1_67, %c0_68, %c0_69] : memref<1x2x1x16xf32, #tpu.memory_space<vmem>>, vector<1x1x1x16xf32>
    %78 = vector.shape_cast %77 : vector<1x1x1x16xf32> to vector<1x16xf32>
    %79 = vector.broadcast %78 : vector<1x16xf32> to vector<16x16xf32>
    %80 = arith.addf %76, %79 : vector<16x16xf32>
    %81 = vector.broadcast %7 : vector<16x1xf32> to vector<16x16xf32>
    %82 = arith.mulf %66, %81 : vector<16x16xf32>
    %83 = vector.shape_cast %82 : vector<16x16xf32> to vector<2x8x16xf32>
    %84 = vector.shape_cast %73 : vector<16x16xf32> to vector<2x8x16xf32>
    %85 = vector.shape_cast %80 : vector<16x16xf32> to vector<2x8x16xf32>
    "tpu.trace_start"() <{level = 10 : i32, message = "bqd,bkd->bqk"}> : () -> ()
    %cst_70 = arith.constant dense<0.000000e+00> : vector<2x8x8xf32>
    %86 = tpu.matmul %83, %84, %cst_70 {dimension_numbers = #tpu.dot_dimension_numbers<[2], [2], [1], [1], [0, 0, 0, 1, 1, 1], [0], [0]>} : vector<2x8x16xf32>, vector<2x8x16xf32>, vector<2x8x8xf32> -> vector<2x8x8xf32>
    %cst_71 = arith.constant -1.000000e+32 : f32
    "tpu.trace_stop"() : () -> ()
    %87 = vector.shape_cast %11 : vector<1x8x8xi1> to vector<1x8x8xi1>
    %88 = vector.broadcast %87 : vector<1x8x8xi1> to vector<2x8x8xi1>
    %89 = vector.broadcast %cst_71 : f32 to vector<2x8x8xf32>
    %90 = arith.select %88, %86, %89 : vector<2x8x8xi1>, vector<2x8x8xf32>
    %cst_72 = arith.constant dense<0xFF800000> : vector<2x8xf32>
    %91 = vector.multi_reduction <maximumf>, %90, %cst_72 [2] : vector<2x8x8xf32> to vector<2x8xf32>
    %92 = vector.shape_cast %91 : vector<2x8xf32> to vector<2x8x1xf32>
    %93 = vector.broadcast %92 : vector<2x8x1xf32> to vector<2x8x8xf32>
    %94 = arith.subf %90, %93 : vector<2x8x8xf32>
    %95 = math.exp %94 : vector<2x8x8xf32>
    %cst_73 = arith.constant dense<0.000000e+00> : vector<2x8xf32>
    %96 = vector.multi_reduction <add>, %95, %cst_73 [2] : vector<2x8x8xf32> to vector<2x8xf32>
    %97 = vector.shape_cast %96 : vector<2x8xf32> to vector<2x8x1xf32>
    %98 = tpu.reciprocal %97 : vector<2x8x1xf32> -> vector<2x8x1xf32>
    %99 = vector.broadcast %98 : vector<2x8x1xf32> to vector<2x8x8xf32>
    %100 = arith.mulf %95, %99 : vector<2x8x8xf32>
    "tpu.trace_start"() <{level = 10 : i32, message = "bqk,bkd->bqd"}> : () -> ()
    %cst_74 = arith.constant dense<0.000000e+00> : vector<2x8x16xf32>
    %101 = tpu.matmul %100, %85, %cst_74 {dimension_numbers = #tpu.dot_dimension_numbers<[2], [1], [1], [2], [0, 0, 0, 1, 1, 2], [0], [0]>} : vector<2x8x8xf32>, vector<2x8x16xf32>, vector<2x8x16xf32> -> vector<2x8x16xf32>
    "tpu.trace_stop"() : () -> ()
    %102 = vector.shape_cast %101 : vector<2x8x16xf32> to vector<16x16xf32>
    %c0_75 = arith.constant 0 : index
    %c1_76 = arith.constant 1 : index
    %c0_77 = arith.constant 0 : index
    %c0_78 = arith.constant 0 : index
    %103 = vector.load %arg12[%c0_75, %c1_76, %c0_77, %c0_78] : memref<1x2x16x32xf32, #tpu.memory_space<vmem>>, vector<1x1x16x32xf32>
    %104 = vector.shape_cast %103 : vector<1x1x16x32xf32> to vector<16x32xf32>
    %cst_79 = arith.constant dense<0.000000e+00> : vector<16x32xf32>
    %105 = tpu.matmul %102, %104, %cst_79 {dimension_numbers = #tpu.dot_dimension_numbers<[1], [0], [0], [1], [0, 0, 1, 1], [], []>} : vector<16x16xf32>, vector<16x32xf32>, vector<16x32xf32> -> vector<16x32xf32>
    %106 = arith.addf %59, %105 : vector<16x32xf32>
    %c0_80 = arith.constant 0 : index
    %c0_81 = arith.constant 0 : index
    %107 = vector.load %arg5[%c0_80, %c0_81] : memref<16x1xf32, #tpu.memory_space<vmem>>, vector<16x1xf32>
    %108 = vector.broadcast %107 : vector<16x1xf32> to vector<16x32xf32>
    %109 = arith.mulf %106, %108 : vector<16x32xf32>
    %c0_82 = arith.constant 0 : index
    %c0_83 = arith.constant 0 : index
    %c0_84 = arith.constant 0 : index
    %110 = vector.load %arg13[%c0_82, %c0_83, %c0_84] : memref<1x1x32xf32, #tpu.memory_space<vmem>>, vector<1x1x32xf32>
    %111 = vector.shape_cast %110 : vector<1x1x32xf32> to vector<1x32xf32>
    %112 = vector.broadcast %111 : vector<1x32xf32> to vector<16x32xf32>
    %113 = arith.addf %109, %112 : vector<16x32xf32>
    %114 = arith.addf %3, %113 : vector<16x32xf32>
    %cst_85 = arith.constant dense<0.000000e+00> : vector<16xf32>
    %115 = vector.multi_reduction <add>, %114, %cst_85 [1] : vector<16x32xf32> to vector<16xf32>
    %116 = vector.shape_cast %115 : vector<16xf32> to vector<16x1xf32>
    %cst_86 = arith.constant 3.200000e+01 : f32
    %117 = vector.broadcast %cst_86 : f32 to vector<16x1xf32>
    %118 = arith.divf %116, %117 : vector<16x1xf32>
    %119 = vector.broadcast %118 : vector<16x1xf32> to vector<16x32xf32>
    %120 = arith.subf %114, %119 : vector<16x32xf32>
    %121 = arith.mulf %120, %120 : vector<16x32xf32>
    %cst_87 = arith.constant dense<0.000000e+00> : vector<16xf32>
    %122 = vector.multi_reduction <add>, %121, %cst_87 [1] : vector<16x32xf32> to vector<16xf32>
    %123 = vector.shape_cast %122 : vector<16xf32> to vector<16x1xf32>
    %cst_88 = arith.constant 3.200000e+01 : f32
    %124 = vector.broadcast %cst_88 : f32 to vector<16x1xf32>
    %125 = arith.divf %123, %124 : vector<16x1xf32>
    %126 = vector.broadcast %118 : vector<16x1xf32> to vector<16x32xf32>
    %127 = arith.subf %114, %126 : vector<16x32xf32>
    %cst_89 = arith.constant 9.99999974E-6 : f32
    %128 = vector.broadcast %cst_89 : f32 to vector<16x1xf32>
    %129 = arith.addf %125, %128 : vector<16x1xf32>
    %130 = math.rsqrt %129 : vector<16x1xf32>
    %131 = vector.broadcast %130 : vector<16x1xf32> to vector<16x32xf32>
    %132 = arith.mulf %127, %131 : vector<16x32xf32>
    %c0_90 = arith.constant 0 : index
    %c0_91 = arith.constant 0 : index
    %c0_92 = arith.constant 0 : index
    %133 = vector.load %arg14[%c0_90, %c0_91, %c0_92] : memref<1x1x32xf32, #tpu.memory_space<vmem>>, vector<1x1x32xf32>
    %134 = vector.shape_cast %133 : vector<1x1x32xf32> to vector<1x32xf32>
    %135 = vector.broadcast %134 : vector<1x32xf32> to vector<16x32xf32>
    %136 = arith.mulf %132, %135 : vector<16x32xf32>
    %c0_93 = arith.constant 0 : index
    %c0_94 = arith.constant 0 : index
    %c0_95 = arith.constant 0 : index
    %137 = vector.load %arg15[%c0_93, %c0_94, %c0_95] : memref<1x1x32xf32, #tpu.memory_space<vmem>>, vector<1x1x32xf32>
    %138 = vector.shape_cast %137 : vector<1x1x32xf32> to vector<1x32xf32>
    %139 = vector.broadcast %138 : vector<1x32xf32> to vector<16x32xf32>
    %140 = arith.addf %136, %139 : vector<16x32xf32>
    %c0_96 = arith.constant 0 : index
    %c0_97 = arith.constant 0 : index
    %c0_98 = arith.constant 0 : index
    %141 = vector.load %arg16[%c0_96, %c0_97, %c0_98] : memref<1x32x64xf32, #tpu.memory_space<vmem>>, vector<1x32x64xf32>
    %142 = vector.shape_cast %141 : vector<1x32x64xf32> to vector<32x64xf32>
    %cst_99 = arith.constant dense<0.000000e+00> : vector<16x64xf32>
    %143 = tpu.matmul %140, %142, %cst_99 {dimension_numbers = #tpu.dot_dimension_numbers<[1], [0], [0], [1], [0, 0, 1, 1], [], []>} : vector<16x32xf32>, vector<32x64xf32>, vector<16x64xf32> -> vector<16x64xf32>
    %c0_100 = arith.constant 0 : index
    %c0_101 = arith.constant 0 : index
    %c0_102 = arith.constant 0 : index
    %144 = vector.load %arg17[%c0_100, %c0_101, %c0_102] : memref<1x1x64xf32, #tpu.memory_space<vmem>>, vector<1x1x64xf32>
    %145 = vector.shape_cast %144 : vector<1x1x64xf32> to vector<1x64xf32>
    %146 = vector.broadcast %145 : vector<1x64xf32> to vector<16x64xf32>
    %147 = arith.addf %143, %146 : vector<16x64xf32>
    %cst_103 = arith.constant 0.000000e+00 : f32
    %148 = vector.broadcast %cst_103 : f32 to vector<16x64xf32>
    %149 = arith.maximumf %147, %148 : vector<16x64xf32>
    %c0_104 = arith.constant 0 : index
    %c0_105 = arith.constant 0 : index
    %c0_106 = arith.constant 0 : index
    %150 = vector.load %arg18[%c0_104, %c0_105, %c0_106] : memref<1x64x32xf32, #tpu.memory_space<vmem>>, vector<1x64x32xf32>
    %151 = vector.shape_cast %150 : vector<1x64x32xf32> to vector<64x32xf32>
    %cst_107 = arith.constant dense<0.000000e+00> : vector<16x32xf32>
    %152 = tpu.matmul %149, %151, %cst_107 {dimension_numbers = #tpu.dot_dimension_numbers<[1], [0], [0], [1], [0, 0, 1, 1], [], []>} : vector<16x64xf32>, vector<64x32xf32>, vector<16x32xf32> -> vector<16x32xf32>
    %c0_108 = arith.constant 0 : index
    %c0_109 = arith.constant 0 : index
    %c0_110 = arith.constant 0 : index
    %153 = vector.load %arg19[%c0_108, %c0_109, %c0_110] : memref<1x1x32xf32, #tpu.memory_space<vmem>>, vector<1x1x32xf32>
    %154 = vector.shape_cast %153 : vector<1x1x32xf32> to vector<1x32xf32>
    %155 = vector.broadcast %154 : vector<1x32xf32> to vector<16x32xf32>
    %156 = arith.addf %152, %155 : vector<16x32xf32>
    %157 = arith.addf %140, %156 : vector<16x32xf32>
    %cst_111 = arith.constant dense<0.000000e+00> : vector<16xf32>
    %158 = vector.multi_reduction <add>, %157, %cst_111 [1] : vector<16x32xf32> to vector<16xf32>
    %159 = vector.shape_cast %158 : vector<16xf32> to vector<16x1xf32>
    %cst_112 = arith.constant 3.200000e+01 : f32
    %160 = vector.broadcast %cst_112 : f32 to vector<16x1xf32>
    %161 = arith.divf %159, %160 : vector<16x1xf32>
    %162 = vector.broadcast %161 : vector<16x1xf32> to vector<16x32xf32>
    %163 = arith.subf %157, %162 : vector<16x32xf32>
    %164 = arith.mulf %163, %163 : vector<16x32xf32>
    %cst_113 = arith.constant dense<0.000000e+00> : vector<16xf32>
    %165 = vector.multi_reduction <add>, %164, %cst_113 [1] : vector<16x32xf32> to vector<16xf32>
    %166 = vector.shape_cast %165 : vector<16xf32> to vector<16x1xf32>
    %cst_114 = arith.constant 3.200000e+01 : f32
    %167 = vector.broadcast %cst_114 : f32 to vector<16x1xf32>
    %168 = arith.divf %166, %167 : vector<16x1xf32>
    %169 = vector.broadcast %161 : vector<16x1xf32> to vector<16x32xf32>
    %170 = arith.subf %157, %169 : vector<16x32xf32>
    %cst_115 = arith.constant 9.99999974E-6 : f32
    %171 = vector.broadcast %cst_115 : f32 to vector<16x1xf32>
    %172 = arith.addf %168, %171 : vector<16x1xf32>
    %173 = math.rsqrt %172 : vector<16x1xf32>
    %174 = vector.broadcast %173 : vector<16x1xf32> to vector<16x32xf32>
    %175 = arith.mulf %170, %174 : vector<16x32xf32>
    %c0_116 = arith.constant 0 : index
    %c0_117 = arith.constant 0 : index
    %c0_118 = arith.constant 0 : index
    %176 = vector.load %arg20[%c0_116, %c0_117, %c0_118] : memref<1x1x32xf32, #tpu.memory_space<vmem>>, vector<1x1x32xf32>
    %177 = vector.shape_cast %176 : vector<1x1x32xf32> to vector<1x32xf32>
    %178 = vector.broadcast %177 : vector<1x32xf32> to vector<16x32xf32>
    %179 = arith.mulf %175, %178 : vector<16x32xf32>
    %c0_119 = arith.constant 0 : index
    %c0_120 = arith.constant 0 : index
    %c0_121 = arith.constant 0 : index
    %180 = vector.load %arg21[%c0_119, %c0_120, %c0_121] : memref<1x1x32xf32, #tpu.memory_space<vmem>>, vector<1x1x32xf32>
    %181 = vector.shape_cast %180 : vector<1x1x32xf32> to vector<1x32xf32>
    %182 = vector.broadcast %181 : vector<1x32xf32> to vector<16x32xf32>
    %183 = arith.addf %179, %182 : vector<16x32xf32>
    %c0_122 = arith.constant 0 : index
    %c0_123 = arith.constant 0 : index
    %184 = vector.load %arg23[%c0_122, %c0_123] : memref<16x32xf32, #tpu.memory_space<vmem>>, vector<16x32xf32>
    tpu.vector_store %arg23[%c0_122, %c0_123], %183 {strides = array<i32>} : memref<16x32xf32, #tpu.memory_space<vmem>>, vector<16x32xf32>,
    %c0_124 = arith.constant 0 : index
    %c0_125 = arith.constant 0 : index
    %185 = vector.load %arg22[%c0_124, %c0_125] : memref<16x32xf32, #tpu.memory_space<vmem>>, vector<16x32xf32>
    tpu.vector_store %arg22[%c0_124, %c0_125], %183 {strides = array<i32>} : memref<16x32xf32, #tpu.memory_space<vmem>>, vector<16x32xf32>,
    return
  }
  func.func @transform_0(%arg0: i32, %arg1: i32) -> (i32, i32) {
    %c0_i32 = arith.constant 0 : i32
    %c0_i32_0 = arith.constant 0 : i32
    return %arg0, %c0_i32 : i32, i32
  }
  func.func @transform_1(%arg0: i32, %arg1: i32) -> (i32, i32) {
    %c0_i32 = arith.constant 0 : i32
    %c0_i32_0 = arith.constant 0 : i32
    return %arg0, %c0_i32 : i32, i32
  }
  func.func @transform_2(%arg0: i32, %arg1: i32) -> (i32, i32) {
    %c0_i32 = arith.constant 0 : i32
    %c0_i32_0 = arith.constant 0 : i32
    return %arg0, %c0_i32 : i32, i32
  }
  func.func @transform_3(%arg0: i32, %arg1: i32) -> (i32, i32) {
    %c0_i32 = arith.constant 0 : i32
    %c0_i32_0 = arith.constant 0 : i32
    return %arg0, %c0_i32 : i32, i32
  }
  func.func @transform_4(%arg0: i32, %arg1: i32) -> (i32, i32, i32, i32) {
    %c0_i32 = arith.constant 0 : i32
    %c0_i32_0 = arith.constant 0 : i32
    %c0_i32_1 = arith.constant 0 : i32
    %c0_i32_2 = arith.constant 0 : i32
    return %arg1, %c0_i32, %c0_i32_0, %c0_i32_1 : i32, i32, i32, i32
  }
  func.func @transform_5(%arg0: i32, %arg1: i32) -> (i32, i32, i32, i32) {
    %c0_i32 = arith.constant 0 : i32
    %c0_i32_0 = arith.constant 0 : i32
    %c0_i32_1 = arith.constant 0 : i32
    %c0_i32_2 = arith.constant 0 : i32
    return %arg1, %c0_i32, %c0_i32_0, %c0_i32_1 : i32, i32, i32, i32
  }
  func.func @transform_6(%arg0: i32, %arg1: i32) -> (i32, i32, i32, i32) {
    %c0_i32 = arith.constant 0 : i32
    %c0_i32_0 = arith.constant 0 : i32
    %c0_i32_1 = arith.constant 0 : i32
    %c0_i32_2 = arith.constant 0 : i32
    return %arg1, %c0_i32, %c0_i32_0, %c0_i32_1 : i32, i32, i32, i32
  }
  func.func @transform_7(%arg0: i32, %arg1: i32) -> (i32, i32, i32, i32) {
    %c0_i32 = arith.constant 0 : i32
    %c0_i32_0 = arith.constant 0 : i32
    %c0_i32_1 = arith.constant 0 : i32
    %c0_i32_2 = arith.constant 0 : i32
    return %arg1, %c0_i32, %c0_i32_0, %c0_i32_1 : i32, i32, i32, i32
  }
  func.func @transform_8(%arg0: i32, %arg1: i32) -> (i32, i32, i32, i32) {
    %c0_i32 = arith.constant 0 : i32
    %c0_i32_0 = arith.constant 0 : i32
    %c0_i32_1 = arith.constant 0 : i32
    %c0_i32_2 = arith.constant 0 : i32
    return %arg1, %c0_i32, %c0_i32_0, %c0_i32_1 : i32, i32, i32, i32
  }
  func.func @transform_9(%arg0: i32, %arg1: i32) -> (i32, i32, i32, i32) {
    %c0_i32 = arith.constant 0 : i32
    %c0_i32_0 = arith.constant 0 : i32
    %c0_i32_1 = arith.constant 0 : i32
    %c0_i32_2 = arith.constant 0 : i32
    return %arg1, %c0_i32, %c0_i32_0, %c0_i32_1 : i32, i32, i32, i32
  }
  func.func @transform_10(%arg0: i32, %arg1: i32) -> (i32, i32, i32, i32) {
    %c0_i32 = arith.constant 0 : i32
    %c0_i32_0 = arith.constant 0 : i32
    %c0_i32_1 = arith.constant 0 : i32
    %c0_i32_2 = arith.constant 0 : i32
    return %arg1, %c0_i32, %c0_i32_0, %c0_i32_1 : i32, i32, i32, i32
  }
  func.func @transform_11(%arg0: i32, %arg1: i32) -> (i32, i32, i32) {
    %c0_i32 = arith.constant 0 : i32
    %c0_i32_0 = arith.constant 0 : i32
    %c0_i32_1 = arith.constant 0 : i32
    return %arg1, %c0_i32, %c0_i32_0 : i32, i32, i32
  }
  func.func @transform_12(%arg0: i32, %arg1: i32) -> (i32, i32, i32) {
    %c0_i32 = arith.constant 0 : i32
    %c0_i32_0 = arith.constant 0 : i32
    %c0_i32_1 = arith.constant 0 : i32
    return %arg1, %c0_i32, %c0_i32_0 : i32, i32, i32
  }
  func.func @transform_13(%arg0: i32, %arg1: i32) -> (i32, i32, i32) {
    %c0_i32 = arith.constant 0 : i32
    %c0_i32_0 = arith.constant 0 : i32
    %c0_i32_1 = arith.constant 0 : i32
    return %arg1, %c0_i32, %c0_i32_0 : i32, i32, i32
  }
  func.func @transform_14(%arg0: i32, %arg1: i32) -> (i32, i32, i32) {
    %c0_i32 = arith.constant 0 : i32
    %c0_i32_0 = arith.constant 0 : i32
    %c0_i32_1 = arith.constant 0 : i32
    return %arg1, %c0_i32, %c0_i32_0 : i32, i32, i32
  }
  func.func @transform_15(%arg0: i32, %arg1: i32) -> (i32, i32, i32) {
    %c0_i32 = arith.constant 0 : i32
    %c0_i32_0 = arith.constant 0 : i32
    %c0_i32_1 = arith.constant 0 : i32
    return %arg1, %c0_i32, %c0_i32_0 : i32, i32, i32
  }
  func.func @transform_16(%arg0: i32, %arg1: i32) -> (i32, i32, i32) {
    %c0_i32 = arith.constant 0 : i32
    %c0_i32_0 = arith.constant 0 : i32
    %c0_i32_1 = arith.constant 0 : i32
    return %arg1, %c0_i32, %c0_i32_0 : i32, i32, i32
  }
  func.func @transform_17(%arg0: i32, %arg1: i32) -> (i32, i32, i32) {
    %c0_i32 = arith.constant 0 : i32
    %c0_i32_0 = arith.constant 0 : i32
    %c0_i32_1 = arith.constant 0 : i32
    return %arg1, %c0_i32, %c0_i32_0 : i32, i32, i32
  }
  func.func @transform_18(%arg0: i32, %arg1: i32) -> (i32, i32, i32) {
    %c0_i32 = arith.constant 0 : i32
    %c0_i32_0 = arith.constant 0 : i32
    %c0_i32_1 = arith.constant 0 : i32
    return %arg1, %c0_i32, %c0_i32_0 : i32, i32, i32
  }
  func.func @transform_19(%arg0: i32, %arg1: i32) -> (i32, i32, i32) {
    %c0_i32 = arith.constant 0 : i32
    %c0_i32_0 = arith.constant 0 : i32
    %c0_i32_1 = arith.constant 0 : i32
    return %arg1, %c0_i32, %c0_i32_0 : i32, i32, i32
  }
  func.func @transform_20(%arg0: i32, %arg1: i32) -> (i32, i32) {
    %c0_i32 = arith.constant 0 : i32
    %c0_i32_0 = arith.constant 0 : i32
    return %arg0, %c0_i32 : i32, i32
  }
}

</mosaic_0001>

<llo_original>
// kernel: tpu_custom_call.1
$region0: #{tpu_custom_call.1}
  #allocation0 [shape = 'u32[]', space=smem, size = 0x4, offset = 0x4, fixed_abs, tag = 'smem constant byte address 0x4 - core index']
  #allocation1 [shape = 'u32[72,128]{1,0:T(1,128)}', space=vmem, size = 0x9000, scoped, tag = 'internal scratch']
  #allocation2 [shape = 'f32[16,32]{1,0:T(8,128)}', space=vmem, size = 0x2000, scoped, tag = 'scratch operand']
  %s0 = inlined_call_operand.vmem [shape: f32[16,32], index: 0, kind: input, shape index: {}]
  %s1 = inlined_call_operand.vmem [shape: f32[16,32], index: 1, kind: input, shape index: {}]
  %s2 = inlined_call_operand.vmem [shape: f32[16,1], index: 2, kind: input, shape index: {}]
  %s3 = inlined_call_operand.vmem [shape: f32[16,1], index: 3, kind: input, shape index: {}]
  %s4 = inlined_call_operand.vmem [shape: f32[2,2,32,16], index: 4, kind: input, shape index: {}]
  %s5 = inlined_call_operand.vmem [shape: f32[2,2,1,16], index: 5, kind: input, shape index: {}]
  %s6 = inlined_call_operand.vmem [shape: f32[2,2,32,16], index: 6, kind: input, shape index: {}]
  %s7 = inlined_call_operand.vmem [shape: f32[2,2,1,16], index: 7, kind: input, shape index: {}]
  %s8 = inlined_call_operand.vmem [shape: f32[2,2,32,16], index: 8, kind: input, shape index: {}]
  %s9 = inlined_call_operand.vmem [shape: f32[2,2,1,16], index: 9, kind: input, shape index: {}]
  %s10 = inlined_call_operand.vmem [shape: f32[2,2,16,32], index: 10, kind: input, shape index: {}]
  %s11 = inlined_call_operand.vmem [shape: f32[2,1,32], index: 11, kind: input, shape index: {}]
  %s12 = inlined_call_operand.vmem [shape: f32[2,1,32], index: 12, kind: input, shape index: {}]
  %s13 = inlined_call_operand.vmem [shape: f32[2,1,32], index: 13, kind: input, shape index: {}]
  %s14 = inlined_call_operand.vmem [shape: f32[2,32,64], index: 14, kind: input, shape index: {}]
  %s15 = inlined_call_operand.vmem [shape: f32[2,1,64], index: 15, kind: input, shape index: {}]
  %s16 = inlined_call_operand.vmem [shape: f32[2,64,32], index: 16, kind: input, shape index: {}]
  %s17 = inlined_call_operand.vmem [shape: f32[2,1,32], index: 17, kind: input, shape index: {}]
  %s18 = inlined_call_operand.vmem [shape: f32[2,1,32], index: 18, kind: input, shape index: {}]
  %s19 = inlined_call_operand.vmem [shape: f32[2,1,32], index: 19, kind: input, shape index: {}]
  %s20 = inlined_call_operand.hbm [shape: f32[16,32], index: 20, kind: output, shape index: {}]
  %s21 = sld [smem:[#allocation0]]
  $region117: #{tpu_custom_call.1} parent=0
    _
  %s23 = ssub.s32 1, %s21
  %s24 = scalar_select 0, %s23, %s21
  $region1: #{tpu_custom_call.1} parent=0
    #allocation3 [shape = 'u8[8192]{0}', space=vmem, size = 0x2000, scoped, tag = 'output window, operand 0, single buffered']
    #allocation4 [shape = 's32[2]{0}', space=sflag, size = 0x8, scoped, tag = 'scoped memory for tpu_custom_call.1']
    %25 = vsyncpa [#allocation4], 0
    loop: start=0, step=1, limit=4
    $region2: #{tpu_custom_call.1} parent=1 // loop_pre_header
      _
    $region3: #{tpu_custom_call.1} parent=1 // loop_header
      %s27 = sphi 0, %s31
      %p28 = scmp.ge.s32.totalorder %s27, 4
      %s34 = sphi 0, %s46
      %s35 = sphi 0, %s42
      %s36 = sphi 0, %s34
      %s37 = sphi 0, %s35
      %s38 = sphi 0, %s36
      %s39 = sphi 0, %s37
      %s49 = sphi 0, %s51
      %s52 = sphi 0, %s49
      %s53 = sphi 0, %s52
      %s69 = sphi 0, %s53
      %s75 = sphi 0, %s77
      %s78 = sphi 0, %s75
      %s79 = sphi 0, %s78
      %s95 = sphi 0, %s79
      %s101 = sphi 0, %s103
      %s104 = sphi 0, %s101
      %s105 = sphi 0, %s104
      %s121 = sphi 0, %s105
      %s127 = sphi 0, %s129
      %s130 = sphi 0, %s127
      %s131 = sphi 0, %s130
      %s147 = sphi 0, %s131
      %s153 = sphi 0, %s155
      %s156 = sphi 0, %s153
      %s157 = sphi 0, %s156
      %s173 = sphi 0, %s157
      %s179 = sphi 0, %s181
      %s182 = sphi 0, %s179
      %s183 = sphi 0, %s182
      %s199 = sphi 0, %s183
      %s205 = sphi 0, %s207
      %s208 = sphi 0, %s205
      %s209 = sphi 0, %s208
      %s225 = sphi 0, %s209
      %s231 = sphi 0, %s233
      %s234 = sphi 0, %s231
      %s235 = sphi 0, %s234
      %s251 = sphi 0, %s235
      %s257 = sphi 0, %s259
      %s260 = sphi 0, %s257
      %s261 = sphi 0, %s260
      %s277 = sphi 0, %s261
      %s283 = sphi 0, %s285
      %s286 = sphi 0, %s283
      %s287 = sphi 0, %s286
      %s303 = sphi 0, %s287
      %s309 = sphi 0, %s311
      %s312 = sphi 0, %s309
      %s313 = sphi 0, %s312
      %s329 = sphi 0, %s313
      %s335 = sphi 0, %s337
      %s338 = sphi 0, %s335
      %s339 = sphi 0, %s338
      %s355 = sphi 0, %s339
      %s361 = sphi 0, %s363
      %s364 = sphi 0, %s361
      %s365 = sphi 0, %s364
      %s381 = sphi 0, %s365
      %s387 = sphi 0, %s389
      %s390 = sphi 0, %s387
      %s391 = sphi 0, %s390
      %s407 = sphi 0, %s391
      %s413 = sphi 0, %s415
      %s416 = sphi 0, %s413
      %s417 = sphi 0, %s416
      %s433 = sphi 0, %s417
      %s439 = sphi 0, %s441
      %s442 = sphi 0, %s439
      %s443 = sphi 0, %s442
      %s459 = sphi 0, %s443
      %s465 = sphi 0, %s467
      %s468 = sphi 0, %s465
      %s469 = sphi 0, %s468
      %s485 = sphi 0, %s469
      %s491 = sphi 0, %s493
      %s494 = sphi 0, %s491
      %s495 = sphi 0, %s494
      %s511 = sphi 0, %s495
      %s517 = sphi 0, %s519
      %s520 = sphi 0, %s517
      %s521 = sphi 0, %s520
      %s537 = sphi 0, %s521
      %s543 = sphi 0, %s545
      %s546 = sphi 0, %s543
      %s547 = sphi 0, %s546
      %s563 = sphi 0, %s547
      %s569 = sphi 0, %s571
      %s572 = sphi 0, %s569
      %s573 = sphi 0, %s572
      %s589 = sphi 0, %s573
    $region4: #{tpu_custom_call.1} parent=1 // loop_header_branch
      %30 = sbr.rel (%p28) target = $region8
    $region5: #{tpu_custom_call.1} parent=1 // loop_body
      %s32 = ssub.s32 %s27, 1
      %s33 = ssub.s32 %s27, 2
      %s40 = sadd.s32 1, %s35
      %p41 = scmp.ge.s32.totalorder %s40, 2
      %s42 = scalar_select %p41, 0, %s40
      %s43 = sadd.s32 1, %s34
      %s44 = scalar_select %p41, %s43, %s34
      %p45 = scmp.ge.s32.totalorder %s44, 1
      %s46 = scalar_select %p45, 0, %s44
      %s47 = ssub.s32 %s34, %s46
      %p48 = scmp.eq.s32.totalorder %s47, 0
      %s50 = sadd.s32 %s49, 1
      %s51 = scalar_select %p48, %s49, %s50
      %p54 = pneg %p48
      %p55 = scmp.eq.s32.totalorder %s27, 1
      %p56 = por %p54, %p55
      %p57 = scmp.ne.s32.totalorder %s49, %s52
      %p58 = scmp.eq.s32.totalorder %s27, 0
      %p59 = por %p57, %p58
      %p60 = scmp.ne.s32.totalorder %s49, %s52
      %p61 = scmp.eq.s32.totalorder %s32, 1
      %p62 = por %p60, %p61
      %p63 = scmp.ne.s32.totalorder %s52, %s53
      %p64 = scmp.eq.s32.totalorder %s32, 0
      %p65 = por %p63, %p64
      %p66 = scmp.ne.s32.totalorder %s52, %s53
      %p67 = scmp.eq.s32.totalorder %s33, 1
      %p68 = por %p66, %p67
      %p70 = scmp.ne.s32.totalorder %s53, %s69
      %p71 = scmp.eq.s32.totalorder %s33, 0
      %p72 = por %p70, %p71
      %s73 = ssub.s32 %s34, %s46
      %p74 = scmp.eq.s32.totalorder %s73, 0
      %s76 = sadd.s32 %s75, 1
      %s77 = scalar_select %p74, %s75, %s76
      %p80 = pneg %p74
      %p81 = scmp.eq.s32.totalorder %s27, 1
      %p82 = por %p80, %p81
      %p83 = scmp.ne.s32.totalorder %s75, %s78
      %p84 = scmp.eq.s32.totalorder %s27, 0
      %p85 = por %p83, %p84
      %p86 = scmp.ne.s32.totalorder %s75, %s78
      %p87 = scmp.eq.s32.totalorder %s32, 1
      %p88 = por %p86, %p87
      %p89 = scmp.ne.s32.totalorder %s78, %s79
      %p90 = scmp.eq.s32.totalorder %s32, 0
      %p91 = por %p89, %p90
      %p92 = scmp.ne.s32.totalorder %s78, %s79
      %p93 = scmp.eq.s32.totalorder %s33, 1
      %p94 = por %p92, %p93
      %p96 = scmp.ne.s32.totalorder %s79, %s95
      %p97 = scmp.eq.s32.totalorder %s33, 0
      %p98 = por %p96, %p97
      %s99 = ssub.s32 %s34, %s46
      %p100 = scmp.eq.s32.totalorder %s99, 0
      %s102 = sadd.s32 %s101, 1
      %s103 = scalar_select %p100, %s101, %s102
      %p106 = pneg %p100
      %p107 = scmp.eq.s32.totalorder %s27, 1
      %p108 = por %p106, %p107
      %p109 = scmp.ne.s32.totalorder %s101, %s104
      %p110 = scmp.eq.s32.totalorder %s27, 0
      %p111 = por %p109, %p110
      %p112 = scmp.ne.s32.totalorder %s101, %s104
      %p113 = scmp.eq.s32.totalorder %s32, 1
      %p114 = por %p112, %p113
      %p115 = scmp.ne.s32.totalorder %s104, %s105
      %p116 = scmp.eq.s32.totalorder %s32, 0
      %p117 = por %p115, %p116
      %p118 = scmp.ne.s32.totalorder %s104, %s105
      %p119 = scmp.eq.s32.totalorder %s33, 1
      %p120 = por %p118, %p119
      %p122 = scmp.ne.s32.totalorder %s105, %s121
      %p123 = scmp.eq.s32.totalorder %s33, 0
      %p124 = por %p122, %p123
      %s125 = ssub.s32 %s34, %s46
      %p126 = scmp.eq.s32.totalorder %s125, 0
      %s128 = sadd.s32 %s127, 1
      %s129 = scalar_select %p126, %s127, %s128
      %p132 = pneg %p126
      %p133 = scmp.eq.s32.totalorder %s27, 1
      %p134 = por %p132, %p133
      %p135 = scmp.ne.s32.totalorder %s127, %s130
      %p136 = scmp.eq.s32.totalorder %s27, 0
      %p137 = por %p135, %p136
      %p138 = scmp.ne.s32.totalorder %s127, %s130
      %p139 = scmp.eq.s32.totalorder %s32, 1
      %p140 = por %p138, %p139
      %p141 = scmp.ne.s32.totalorder %s130, %s131
      %p142 = scmp.eq.s32.totalorder %s32, 0
      %p143 = por %p141, %p142
      %p144 = scmp.ne.s32.totalorder %s130, %s131
      %p145 = scmp.eq.s32.totalorder %s33, 1
      %p146 = por %p144, %p145
      %p148 = scmp.ne.s32.totalorder %s131, %s147
      %p149 = scmp.eq.s32.totalorder %s33, 0
      %p150 = por %p148, %p149
      %s151 = ssub.s32 %s35, %s42
      %p152 = scmp.eq.s32.totalorder %s151, 0
      %s154 = sadd.s32 %s153, 1
      %s155 = scalar_select %p152, %s153, %s154
      %p158 = pneg %p152
      %p159 = scmp.eq.s32.totalorder %s27, 1
      %p160 = por %p158, %p159
      %p161 = scmp.ne.s32.totalorder %s153, %s156
      %p162 = scmp.eq.s32.totalorder %s27, 0
      %p163 = por %p161, %p162
      %p164 = scmp.ne.s32.totalorder %s153, %s156
      %p165 = scmp.eq.s32.totalorder %s32, 1
      %p166 = por %p164, %p165
      %p167 = scmp.ne.s32.totalorder %s156, %s157
      %p168 = scmp.eq.s32.totalorder %s32, 0
      %p169 = por %p167, %p168
      %p170 = scmp.ne.s32.totalorder %s156, %s157
      %p171 = scmp.eq.s32.totalorder %s33, 1
      %p172 = por %p170, %p171
      %p174 = scmp.ne.s32.totalorder %s157, %s173
      %p175 = scmp.eq.s32.totalorder %s33, 0
      %p176 = por %p174, %p175
      %s177 = ssub.s32 %s35, %s42
      %p178 = scmp.eq.s32.totalorder %s177, 0
      %s180 = sadd.s32 %s179, 1
      %s181 = scalar_select %p178, %s179, %s180
      %p184 = pneg %p178
      %p185 = scmp.eq.s32.totalorder %s27, 1
      %p186 = por %p184, %p185
      %p187 = scmp.ne.s32.totalorder %s179, %s182
      %p188 = scmp.eq.s32.totalorder %s27, 0
      %p189 = por %p187, %p188
      %p190 = scmp.ne.s32.totalorder %s179, %s182
      %p191 = scmp.eq.s32.totalorder %s32, 1
      %p192 = por %p190, %p191
      %p193 = scmp.ne.s32.totalorder %s182, %s183
      %p194 = scmp.eq.s32.totalorder %s32, 0
      %p195 = por %p193, %p194
      %p196 = scmp.ne.s32.totalorder %s182, %s183
      %p197 = scmp.eq.s32.totalorder %s33, 1
      %p198 = por %p196, %p197
      %p200 = scmp.ne.s32.totalorder %s183, %s199
      %p201 = scmp.eq.s32.totalorder %s33, 0
      %p202 = por %p200, %p201
      %s203 = ssub.s32 %s35, %s42
      %p204 = scmp.eq.s32.totalorder %s203, 0
      %s206 = sadd.s32 %s205, 1
      %s207 = scalar_select %p204, %s205, %s206
      %p210 = pneg %p204
      %p211 = scmp.eq.s32.totalorder %s27, 1
      %p212 = por %p210, %p211
      %p213 = scmp.ne.s32.totalorder %s205, %s208
      %p214 = scmp.eq.s32.totalorder %s27, 0
      %p215 = por %p213, %p214
      %p216 = scmp.ne.s32.totalorder %s205, %s208
      %p217 = scmp.eq.s32.totalorder %s32, 1
      %p218 = por %p216, %p217
      %p219 = scmp.ne.s32.totalorder %s208, %s209
      %p220 = scmp.eq.s32.totalorder %s32, 0
      %p221 = por %p219, %p220
      %p222 = scmp.ne.s32.totalorder %s208, %s209
      %p223 = scmp.eq.s32.totalorder %s33, 1
      %p224 = por %p222, %p223
      %p226 = scmp.ne.s32.totalorder %s209, %s225
      %p227 = scmp.eq.s32.totalorder %s33, 0
      %p228 = por %p226, %p227
      %s229 = ssub.s32 %s35, %s42
      %p230 = scmp.eq.s32.totalorder %s229, 0
      %s232 = sadd.s32 %s231, 1
      %s233 = scalar_select %p230, %s231, %s232
      %p236 = pneg %p230
      %p237 = scmp.eq.s32.totalorder %s27, 1
      %p238 = por %p236, %p237
      %p239 = scmp.ne.s32.totalorder %s231, %s234
      %p240 = scmp.eq.s32.totalorder %s27, 0
      %p241 = por %p239, %p240
      %p242 = scmp.ne.s32.totalorder %s231, %s234
      %p243 = scmp.eq.s32.totalorder %s32, 1
      %p244 = por %p242, %p243
      %p245 = scmp.ne.s32.totalorder %s234, %s235
      %p246 = scmp.eq.s32.totalorder %s32, 0
      %p247 = por %p245, %p246
      %p248 = scmp.ne.s32.totalorder %s234, %s235
      %p249 = scmp.eq.s32.totalorder %s33, 1
      %p250 = por %p248, %p249
      %p252 = scmp.ne.s32.totalorder %s235, %s251
      %p253 = scmp.eq.s32.totalorder %s33, 0
      %p254 = por %p252, %p253
      %s255 = ssub.s32 %s35, %s42
      %p256 = scmp.eq.s32.totalorder %s255, 0
      %s258 = sadd.s32 %s257, 1
      %s259 = scalar_select %p256, %s257, %s258
      %p262 = pneg %p256
      %p263 = scmp.eq.s32.totalorder %s27, 1
      %p264 = por %p262, %p263
      %p265 = scmp.ne.s32.totalorder %s257, %s260
      %p266 = scmp.eq.s32.totalorder %s27, 0
      %p267 = por %p265, %p266
      %p268 = scmp.ne.s32.totalorder %s257, %s260
      %p269 = scmp.eq.s32.totalorder %s32, 1
      %p270 = por %p268, %p269
      %p271 = scmp.ne.s32.totalorder %s260, %s261
      %p272 = scmp.eq.s32.totalorder %s32, 0
      %p273 = por %p271, %p272
      %p274 = scmp.ne.s32.totalorder %s260, %s261
      %p275 = scmp.eq.s32.totalorder %s33, 1
      %p276 = por %p274, %p275
      %p278 = scmp.ne.s32.totalorder %s261, %s277
      %p279 = scmp.eq.s32.totalorder %s33, 0
      %p280 = por %p278, %p279
      %s281 = ssub.s32 %s35, %s42
      %p282 = scmp.eq.s32.totalorder %s281, 0
      %s284 = sadd.s32 %s283, 1
      %s285 = scalar_select %p282, %s283, %s284
      %p288 = pneg %p282
      %p289 = scmp.eq.s32.totalorder %s27, 1
      %p290 = por %p288, %p289
      %p291 = scmp.ne.s32.totalorder %s283, %s286
      %p292 = scmp.eq.s32.totalorder %s27, 0
      %p293 = por %p291, %p292
      %p294 = scmp.ne.s32.totalorder %s283, %s286
      %p295 = scmp.eq.s32.totalorder %s32, 1
      %p296 = por %p294, %p295
      %p297 = scmp.ne.s32.totalorder %s286, %s287
      %p298 = scmp.eq.s32.totalorder %s32, 0
      %p299 = por %p297, %p298
      %p300 = scmp.ne.s32.totalorder %s286, %s287
      %p301 = scmp.eq.s32.totalorder %s33, 1
      %p302 = por %p300, %p301
      %p304 = scmp.ne.s32.totalorder %s287, %s303
      %p305 = scmp.eq.s32.totalorder %s33, 0
      %p306 = por %p304, %p305
      %s307 = ssub.s32 %s35, %s42
      %p308 = scmp.eq.s32.totalorder %s307, 0
      %s310 = sadd.s32 %s309, 1
      %s311 = scalar_select %p308, %s309, %s310
      %p314 = pneg %p308
      %p315 = scmp.eq.s32.totalorder %s27, 1
      %p316 = por %p314, %p315
      %p317 = scmp.ne.s32.totalorder %s309, %s312
      %p318 = scmp.eq.s32.totalorder %s27, 0
      %p319 = por %p317, %p318
      %p320 = scmp.ne.s32.totalorder %s309, %s312
      %p321 = scmp.eq.s32.totalorder %s32, 1
      %p322 = por %p320, %p321
      %p323 = scmp.ne.s32.totalorder %s312, %s313
      %p324 = scmp.eq.s32.totalorder %s32, 0
      %p325 = por %p323, %p324
      %p326 = scmp.ne.s32.totalorder %s312, %s313
      %p327 = scmp.eq.s32.totalorder %s33, 1
      %p328 = por %p326, %p327
      %p330 = scmp.ne.s32.totalorder %s313, %s329
      %p331 = scmp.eq.s32.totalorder %s33, 0
      %p332 = por %p330, %p331
      %s333 = ssub.s32 %s35, %s42
      %p334 = scmp.eq.s32.totalorder %s333, 0
      %s336 = sadd.s32 %s335, 1
      %s337 = scalar_select %p334, %s335, %s336
      %p340 = pneg %p334
      %p341 = scmp.eq.s32.totalorder %s27, 1
      %p342 = por %p340, %p341
      %p343 = scmp.ne.s32.totalorder %s335, %s338
      %p344 = scmp.eq.s32.totalorder %s27, 0
      %p345 = por %p343, %p344
      %p346 = scmp.ne.s32.totalorder %s335, %s338
      %p347 = scmp.eq.s32.totalorder %s32, 1
      %p348 = por %p346, %p347
      %p349 = scmp.ne.s32.totalorder %s338, %s339
      %p350 = scmp.eq.s32.totalorder %s32, 0
      %p351 = por %p349, %p350
      %p352 = scmp.ne.s32.totalorder %s338, %s339
      %p353 = scmp.eq.s32.totalorder %s33, 1
      %p354 = por %p352, %p353
      %p356 = scmp.ne.s32.totalorder %s339, %s355
      %p357 = scmp.eq.s32.totalorder %s33, 0
      %p358 = por %p356, %p357
      %s359 = ssub.s32 %s35, %s42
      %p360 = scmp.eq.s32.totalorder %s359, 0
      %s362 = sadd.s32 %s361, 1
      %s363 = scalar_select %p360, %s361, %s362
      %p366 = pneg %p360
      %p367 = scmp.eq.s32.totalorder %s27, 1
      %p368 = por %p366, %p367
      %p369 = scmp.ne.s32.totalorder %s361, %s364
      %p370 = scmp.eq.s32.totalorder %s27, 0
      %p371 = por %p369, %p370
      %p372 = scmp.ne.s32.totalorder %s361, %s364
      %p373 = scmp.eq.s32.totalorder %s32, 1
      %p374 = por %p372, %p373
      %p375 = scmp.ne.s32.totalorder %s364, %s365
      %p376 = scmp.eq.s32.totalorder %s32, 0
      %p377 = por %p375, %p376
      %p378 = scmp.ne.s32.totalorder %s364, %s365
      %p379 = scmp.eq.s32.totalorder %s33, 1
      %p380 = por %p378, %p379
      %p382 = scmp.ne.s32.totalorder %s365, %s381
      %p383 = scmp.eq.s32.totalorder %s33, 0
      %p384 = por %p382, %p383
      %s385 = ssub.s32 %s35, %s42
      %p386 = scmp.eq.s32.totalorder %s385, 0
      %s388 = sadd.s32 %s387, 1
      %s389 = scalar_select %p386, %s387, %s388
      %p392 = pneg %p386
      %p393 = scmp.eq.s32.totalorder %s27, 1
      %p394 = por %p392, %p393
      %p395 = scmp.ne.s32.totalorder %s387, %s390
      %p396 = scmp.eq.s32.totalorder %s27, 0
      %p397 = por %p395, %p396
      %p398 = scmp.ne.s32.totalorder %s387, %s390
      %p399 = scmp.eq.s32.totalorder %s32, 1
      %p400 = por %p398, %p399
      %p401 = scmp.ne.s32.totalorder %s390, %s391
      %p402 = scmp.eq.s32.totalorder %s32, 0
      %p403 = por %p401, %p402
      %p404 = scmp.ne.s32.totalorder %s390, %s391
      %p405 = scmp.eq.s32.totalorder %s33, 1
      %p406 = por %p404, %p405
      %p408 = scmp.ne.s32.totalorder %s391, %s407
      %p409 = scmp.eq.s32.totalorder %s33, 0
      %p410 = por %p408, %p409
      %s411 = ssub.s32 %s35, %s42
      %p412 = scmp.eq.s32.totalorder %s411, 0
      %s414 = sadd.s32 %s413, 1
      %s415 = scalar_select %p412, %s413, %s414
      %p418 = pneg %p412
      %p419 = scmp.eq.s32.totalorder %s27, 1
      %p420 = por %p418, %p419
      %p421 = scmp.ne.s32.totalorder %s413, %s416
      %p422 = scmp.eq.s32.totalorder %s27, 0
      %p423 = por %p421, %p422
      %p424 = scmp.ne.s32.totalorder %s413, %s416
      %p425 = scmp.eq.s32.totalorder %s32, 1
      %p426 = por %p424, %p425
      %p427 = scmp.ne.s32.totalorder %s416, %s417
      %p428 = scmp.eq.s32.totalorder %s32, 0
      %p429 = por %p427, %p428
      %p430 = scmp.ne.s32.totalorder %s416, %s417
      %p431 = scmp.eq.s32.totalorder %s33, 1
      %p432 = por %p430, %p431
      %p434 = scmp.ne.s32.totalorder %s417, %s433
      %p435 = scmp.eq.s32.totalorder %s33, 0
      %p436 = por %p434, %p435
      %s437 = ssub.s32 %s35, %s42
      %p438 = scmp.eq.s32.totalorder %s437, 0
      %s440 = sadd.s32 %s439, 1
      %s441 = scalar_select %p438, %s439, %s440
      %p444 = pneg %p438
      %p445 = scmp.eq.s32.totalorder %s27, 1
      %p446 = por %p444, %p445
      %p447 = scmp.ne.s32.totalorder %s439, %s442
      %p448 = scmp.eq.s32.totalorder %s27, 0
      %p449 = por %p447, %p448
      %p450 = scmp.ne.s32.totalorder %s439, %s442
      %p451 = scmp.eq.s32.totalorder %s32, 1
      %p452 = por %p450, %p451
      %p453 = scmp.ne.s32.totalorder %s442, %s443
      %p454 = scmp.eq.s32.totalorder %s32, 0
      %p455 = por %p453, %p454
      %p456 = scmp.ne.s32.totalorder %s442, %s443
      %p457 = scmp.eq.s32.totalorder %s33, 1
      %p458 = por %p456, %p457
      %p460 = scmp.ne.s32.totalorder %s443, %s459
      %p461 = scmp.eq.s32.totalorder %s33, 0
      %p462 = por %p460, %p461
      %s463 = ssub.s32 %s35, %s42
      %p464 = scmp.eq.s32.totalorder %s463, 0
      %s466 = sadd.s32 %s465, 1
      %s467 = scalar_select %p464, %s465, %s466
      %p470 = pneg %p464
      %p471 = scmp.eq.s32.totalorder %s27, 1
      %p472 = por %p470, %p471
      %p473 = scmp.ne.s32.totalorder %s465, %s468
      %p474 = scmp.eq.s32.totalorder %s27, 0
      %p475 = por %p473, %p474
      %p476 = scmp.ne.s32.totalorder %s465, %s468
      %p477 = scmp.eq.s32.totalorder %s32, 1
      %p478 = por %p476, %p477
      %p479 = scmp.ne.s32.totalorder %s468, %s469
      %p480 = scmp.eq.s32.totalorder %s32, 0
      %p481 = por %p479, %p480
      %p482 = scmp.ne.s32.totalorder %s468, %s469
      %p483 = scmp.eq.s32.totalorder %s33, 1
      %p484 = por %p482, %p483
      %p486 = scmp.ne.s32.totalorder %s469, %s485
      %p487 = scmp.eq.s32.totalorder %s33, 0
      %p488 = por %p486, %p487
      %s489 = ssub.s32 %s35, %s42
      %p490 = scmp.eq.s32.totalorder %s489, 0
      %s492 = sadd.s32 %s491, 1
      %s493 = scalar_select %p490, %s491, %s492
      %p496 = pneg %p490
      %p497 = scmp.eq.s32.totalorder %s27, 1
      %p498 = por %p496, %p497
      %p499 = scmp.ne.s32.totalorder %s491, %s494
      %p500 = scmp.eq.s32.totalorder %s27, 0
      %p501 = por %p499, %p500
      %p502 = scmp.ne.s32.totalorder %s491, %s494
      %p503 = scmp.eq.s32.totalorder %s32, 1
      %p504 = por %p502, %p503
      %p505 = scmp.ne.s32.totalorder %s494, %s495
      %p506 = scmp.eq.s32.totalorder %s32, 0
      %p507 = por %p505, %p506
      %p508 = scmp.ne.s32.totalorder %s494, %s495
      %p509 = scmp.eq.s32.totalorder %s33, 1
      %p510 = por %p508, %p509
      %p512 = scmp.ne.s32.totalorder %s495, %s511
      %p513 = scmp.eq.s32.totalorder %s33, 0
      %p514 = por %p512, %p513
      %s515 = ssub.s32 %s35, %s42
      %p516 = scmp.eq.s32.totalorder %s515, 0
      %s518 = sadd.s32 %s517, 1
      %s519 = scalar_select %p516, %s517, %s518
      %p522 = pneg %p516
      %p523 = scmp.eq.s32.totalorder %s27, 1
      %p524 = por %p522, %p523
      %p525 = scmp.ne.s32.totalorder %s517, %s520
      %p526 = scmp.eq.s32.totalorder %s27, 0
      %p527 = por %p525, %p526
      %p528 = scmp.ne.s32.totalorder %s517, %s520
      %p529 = scmp.eq.s32.totalorder %s32, 1
      %p530 = por %p528, %p529
      %p531 = scmp.ne.s32.totalorder %s520, %s521
      %p532 = scmp.eq.s32.totalorder %s32, 0
      %p533 = por %p531, %p532
      %p534 = scmp.ne.s32.totalorder %s520, %s521
      %p535 = scmp.eq.s32.totalorder %s33, 1
      %p536 = por %p534, %p535
      %p538 = scmp.ne.s32.totalorder %s521, %s537
      %p539 = scmp.eq.s32.totalorder %s33, 0
      %p540 = por %p538, %p539
      %s541 = ssub.s32 %s35, %s42
      %p542 = scmp.eq.s32.totalorder %s541, 0
      %s544 = sadd.s32 %s543, 1
      %s545 = scalar_select %p542, %s543, %s544
      %p548 = pneg %p542
      %p549 = scmp.eq.s32.totalorder %s27, 1
      %p550 = por %p548, %p549
      %p551 = scmp.ne.s32.totalorder %s543, %s546
      %p552 = scmp.eq.s32.totalorder %s27, 0
      %p553 = por %p551, %p552
      %p554 = scmp.ne.s32.totalorder %s543, %s546
      %p555 = scmp.eq.s32.totalorder %s32, 1
      %p556 = por %p554, %p555
      %p557 = scmp.ne.s32.totalorder %s546, %s547
      %p558 = scmp.eq.s32.totalorder %s32, 0
      %p559 = por %p557, %p558
      %p560 = scmp.ne.s32.totalorder %s546, %s547
      %p561 = scmp.eq.s32.totalorder %s33, 1
      %p562 = por %p560, %p561
      %p564 = scmp.ne.s32.totalorder %s547, %s563
      %p565 = scmp.eq.s32.totalorder %s33, 0
      %p566 = por %p564, %p565
      %s567 = ssub.s32 %s34, %s46
      %p568 = scmp.eq.s32.totalorder %s567, 0
      %s570 = sadd.s32 %s569, 1
      %s571 = scalar_select %p568, %s569, %s570
      %p574 = pneg %p568
      %p575 = scmp.eq.s32.totalorder %s27, 1
      %p576 = por %p574, %p575
      %p577 = scmp.ne.s32.totalorder %s569, %s572
      %p578 = scmp.eq.s32.totalorder %s27, 0
      %p579 = por %p577, %p578
      %p580 = scmp.ne.s32.totalorder %s569, %s572
      %p581 = scmp.eq.s32.totalorder %s32, 1
      %p582 = por %p580, %p581
      %p583 = scmp.ne.s32.totalorder %s572, %s573
      %p584 = scmp.eq.s32.totalorder %s32, 0
      %p585 = por %p583, %p584
      %p586 = scmp.ne.s32.totalorder %s572, %s573
      %p587 = scmp.eq.s32.totalorder %s33, 1
      %p588 = por %p586, %p587
      %p590 = scmp.ne.s32.totalorder %s573, %s589
      %p591 = scmp.eq.s32.totalorder %s33, 0
      %p592 = por %p590, %p591
      %p593 = scmp.le.s32.totalorder 1, %s27
      %p594 = scmp.lt.s32.totalorder %s27, 3
      %p595 = pnand %p593, %p594
      %p596 = pneg %p595
      // Predicated region
      $region9: #{tpu_custom_call.1} parent=5 // pred_check
        _
      $region10: #{tpu_custom_call.1} parent=5 // pred_check_branch
        %598 = sbr.rel (%p595) target = $region12
      $region11: #{tpu_custom_call.1} parent=5 // pred_region
        %s599 = ssub.s32 %s27, 1
        // Predicated region
        $region13: #{tpu_custom_call.1} parent=11 // pred_check
          %p600 = pneg %p65
        $region14: #{tpu_custom_call.1} parent=11 // pred_check_branch
          %602 = sbr.rel (%p600) target = $region16
        $region15: #{tpu_custom_call.1} parent=11 // pred_region
          %s603 = smul.u32 2, %s36
          %p604 = scmp.lt.s32.totalorder %s603, 1
          %s605 = scalar_select %p604, %s603, 1
          %s606 = smul.addr %s605, 8
          %s607 = scalar_lea.vmem %s0, %s606
          %s608 = smul.u32 2, %s36
        $region16: #{tpu_custom_call.1} parent=11 // pred_fallthru
          _
        // Predicated region
        $region17: #{tpu_custom_call.1} parent=11 // pred_check
          %p609 = pneg %p91
        $region18: #{tpu_custom_call.1} parent=11 // pred_check_branch
          %611 = sbr.rel (%p609) target = $region20
        $region19: #{tpu_custom_call.1} parent=11 // pred_region
          %s612 = smul.u32 2, %s36
          %p613 = scmp.lt.s32.totalorder %s612, 1
          %s614 = scalar_select %p613, %s612, 1
          %s615 = smul.addr %s614, 8
          %s616 = scalar_lea.vmem %s1, %s615
          %s617 = smul.u32 2, %s36
        $region20: #{tpu_custom_call.1} parent=11 // pred_fallthru
          _
        // Predicated region
        $region21: #{tpu_custom_call.1} parent=11 // pred_check
          %p618 = pneg %p117
        $region22: #{tpu_custom_call.1} parent=11 // pred_check_branch
          %620 = sbr.rel (%p618) target = $region24
        $region23: #{tpu_custom_call.1} parent=11 // pred_region
          %s621 = smul.u32 2, %s36
          %p622 = scmp.lt.s32.totalorder %s621, 1
          %s623 = scalar_select %p622, %s621, 1
          %s624 = smul.addr %s623, 8
          %s625 = scalar_lea.vmem %s2, %s624
          %s626 = smul.u32 2, %s36
        $region24: #{tpu_custom_call.1} parent=11 // pred_fallthru
          _
        // Predicated region
        $region25: #{tpu_custom_call.1} parent=11 // pred_check
          %p627 = pneg %p143
        $region26: #{tpu_custom_call.1} parent=11 // pred_check_branch
          %629 = sbr.rel (%p627) target = $region28
        $region27: #{tpu_custom_call.1} parent=11 // pred_region
          %s630 = smul.u32 2, %s36
          %p631 = scmp.lt.s32.totalorder %s630, 1
          %s632 = scalar_select %p631, %s630, 1
          %s633 = smul.addr %s632, 8
          %s634 = scalar_lea.vmem %s3, %s633
          %s635 = smul.u32 2, %s36
        $region28: #{tpu_custom_call.1} parent=11 // pred_fallthru
          _
      $region12: #{tpu_custom_call.1} parent=5 // pred_fallthru
        _
      %p636 = scmp.lt.s32.totalorder %s27, 2
      // Predicated region
      $region29: #{tpu_custom_call.1} parent=5 // pred_check
        %p637 = pneg %p636
      $region30: #{tpu_custom_call.1} parent=5 // pred_check_branch
        %639 = sbr.rel (%p637) target = $region32
      $region31: #{tpu_custom_call.1} parent=5 // pred_region
        // Predicated region
        $region33: #{tpu_custom_call.1} parent=31 // pred_check
          %p640 = pneg %p163
        $region34: #{tpu_custom_call.1} parent=31 // pred_check_branch
          %642 = sbr.rel (%p640) target = $region36
        $region35: #{tpu_custom_call.1} parent=31 // pred_region
          %p643 = scmp.lt.s32.totalorder %s35, 1
          %s644 = scalar_select %p643, %s35, 1
          %s645 = smul.addr %s644, 8
          %s646 = smul.addr %s645, 8
          %s647 = scalar_lea.vmem %s4, %s646
        $region36: #{tpu_custom_call.1} parent=31 // pred_fallthru
          _
        // Predicated region
        $region37: #{tpu_custom_call.1} parent=31 // pred_check
          %p648 = pneg %p189
        $region38: #{tpu_custom_call.1} parent=31 // pred_check_branch
          %650 = sbr.rel (%p648) target = $region40
        $region39: #{tpu_custom_call.1} parent=31 // pred_region
          %p651 = scmp.lt.s32.totalorder %s35, 1
          %s652 = scalar_select %p651, %s35, 1
          %s653 = smul.addr %s652, 2
          %s654 = scalar_lea.vmem %s5, %s653
        $region40: #{tpu_custom_call.1} parent=31 // pred_fallthru
          _
        // Predicated region
        $region41: #{tpu_custom_call.1} parent=31 // pred_check
          %p655 = pneg %p215
        $region42: #{tpu_custom_call.1} parent=31 // pred_check_branch
          %657 = sbr.rel (%p655) target = $region44
        $region43: #{tpu_custom_call.1} parent=31 // pred_region
          %p658 = scmp.lt.s32.totalorder %s35, 1
          %s659 = scalar_select %p658, %s35, 1
          %s660 = smul.addr %s659, 8
          %s661 = smul.addr %s660, 8
          %s662 = scalar_lea.vmem %s6, %s661
        $region44: #{tpu_custom_call.1} parent=31 // pred_fallthru
          _
        // Predicated region
        $region45: #{tpu_custom_call.1} parent=31 // pred_check
          %p663 = pneg %p241
        $region46: #{tpu_custom_call.1} parent=31 // pred_check_branch
          %665 = sbr.rel (%p663) target = $region48
        $region47: #{tpu_custom_call.1} parent=31 // pred_region
          %p666 = scmp.lt.s32.totalorder %s35, 1
          %s667 = scalar_select %p666, %s35, 1
          %s668 = smul.addr %s667, 2
          %s669 = scalar_lea.vmem %s7, %s668
        $region48: #{tpu_custom_call.1} parent=31 // pred_fallthru
          _
        // Predicated region
        $region49: #{tpu_custom_call.1} parent=31 // pred_check
          %p670 = pneg %p267
        $region50: #{tpu_custom_call.1} parent=31 // pred_check_branch
          %672 = sbr.rel (%p670) target = $region52
        $region51: #{tpu_custom_call.1} parent=31 // pred_region
          %p673 = scmp.lt.s32.totalorder %s35, 1
          %s674 = scalar_select %p673, %s35, 1
          %s675 = smul.addr %s674, 8
          %s676 = smul.addr %s675, 8
          %s677 = scalar_lea.vmem %s8, %s676
        $region52: #{tpu_custom_call.1} parent=31 // pred_fallthru
          _
        // Predicated region
        $region53: #{tpu_custom_call.1} parent=31 // pred_check
          %p678 = pneg %p293
        $region54: #{tpu_custom_call.1} parent=31 // pred_check_branch
          %680 = sbr.rel (%p678) target = $region56
        $region55: #{tpu_custom_call.1} parent=31 // pred_region
          %p681 = scmp.lt.s32.totalorder %s35, 1
          %s682 = scalar_select %p681, %s35, 1
          %s683 = smul.addr %s682, 2
          %s684 = scalar_lea.vmem %s9, %s683
        $region56: #{tpu_custom_call.1} parent=31 // pred_fallthru
          _
        // Predicated region
        $region57: #{tpu_custom_call.1} parent=31 // pred_check
          %p685 = pneg %p319
        $region58: #{tpu_custom_call.1} parent=31 // pred_check_branch
          %687 = sbr.rel (%p685) target = $region60
        $region59: #{tpu_custom_call.1} parent=31 // pred_region
          %p688 = scmp.lt.s32.totalorder %s35, 1
          %s689 = scalar_select %p688, %s35, 1
          %s690 = smul.addr %s689, 4
          %s691 = smul.addr %s690, 8
          %s692 = scalar_lea.vmem %s10, %s691
        $region60: #{tpu_custom_call.1} parent=31 // pred_fallthru
          _
        // Predicated region
        $region61: #{tpu_custom_call.1} parent=31 // pred_check
          %p693 = pneg %p345
        $region62: #{tpu_custom_call.1} parent=31 // pred_check_branch
          %695 = sbr.rel (%p693) target = $region64
        $region63: #{tpu_custom_call.1} parent=31 // pred_region
          %p696 = scmp.lt.s32.totalorder %s35, 1
          %s697 = scalar_select %p696, %s35, 1
          %s698 = scalar_lea.vmem %s11, %s697
        $region64: #{tpu_custom_call.1} parent=31 // pred_fallthru
          _
        // Predicated region
        $region65: #{tpu_custom_call.1} parent=31 // pred_check
          %p699 = pneg %p371
        $region66: #{tpu_custom_call.1} parent=31 // pred_check_branch
          %701 = sbr.rel (%p699) target = $region68
        $region67: #{tpu_custom_call.1} parent=31 // pred_region
          %p702 = scmp.lt.s32.totalorder %s35, 1
          %s703 = scalar_select %p702, %s35, 1
          %s704 = scalar_lea.vmem %s12, %s703
        $region68: #{tpu_custom_call.1} parent=31 // pred_fallthru
          _
        // Predicated region
        $region69: #{tpu_custom_call.1} parent=31 // pred_check
          %p705 = pneg %p397
        $region70: #{tpu_custom_call.1} parent=31 // pred_check_branch
          %707 = sbr.rel (%p705) target = $region72
        $region71: #{tpu_custom_call.1} parent=31 // pred_region
          %p708 = scmp.lt.s32.totalorder %s35, 1
          %s709 = scalar_select %p708, %s35, 1
          %s710 = scalar_lea.vmem %s13, %s709
        $region72: #{tpu_custom_call.1} parent=31 // pred_fallthru
          _
        // Predicated region
        $region73: #{tpu_custom_call.1} parent=31 // pred_check
          %p711 = pneg %p423
        $region74: #{tpu_custom_call.1} parent=31 // pred_check_branch
          %713 = sbr.rel (%p711) target = $region76
        $region75: #{tpu_custom_call.1} parent=31 // pred_region
          %p714 = scmp.lt.s32.totalorder %s35, 1
          %s715 = scalar_select %p714, %s35, 1
          %s716 = smul.addr %s715, 4
          %s717 = smul.addr %s716, 8
          %s718 = scalar_lea.vmem %s14, %s717
        $region76: #{tpu_custom_call.1} parent=31 // pred_fallthru
          _
        // Predicated region
        $region77: #{tpu_custom_call.1} parent=31 // pred_check
          %p719 = pneg %p449
        $region78: #{tpu_custom_call.1} parent=31 // pred_check_branch
          %721 = sbr.rel (%p719) target = $region80
        $region79: #{tpu_custom_call.1} parent=31 // pred_region
          %p722 = scmp.lt.s32.totalorder %s35, 1
          %s723 = scalar_select %p722, %s35, 1
          %s724 = scalar_lea.vmem %s15, %s723
        $region80: #{tpu_custom_call.1} parent=31 // pred_fallthru
          _
        // Predicated region
        $region81: #{tpu_custom_call.1} parent=31 // pred_check
          %p725 = pneg %p475
        $region82: #{tpu_custom_call.1} parent=31 // pred_check_branch
          %727 = sbr.rel (%p725) target = $region84
        $region83: #{tpu_custom_call.1} parent=31 // pred_region
          %p728 = scmp.lt.s32.totalorder %s35, 1
          %s729 = scalar_select %p728, %s35, 1
          %s730 = smul.addr %s729, 8
          %s731 = smul.addr %s730, 8
          %s732 = scalar_lea.vmem %s16, %s731
        $region84: #{tpu_custom_call.1} parent=31 // pred_fallthru
          _
        // Predicated region
        $region85: #{tpu_custom_call.1} parent=31 // pred_check
          %p733 = pneg %p501
        $region86: #{tpu_custom_call.1} parent=31 // pred_check_branch
          %735 = sbr.rel (%p733) target = $region88
        $region87: #{tpu_custom_call.1} parent=31 // pred_region
          %p736 = scmp.lt.s32.totalorder %s35, 1
          %s737 = scalar_select %p736, %s35, 1
          %s738 = scalar_lea.vmem %s17, %s737
        $region88: #{tpu_custom_call.1} parent=31 // pred_fallthru
          _
        // Predicated region
        $region89: #{tpu_custom_call.1} parent=31 // pred_check
          %p739 = pneg %p527
        $region90: #{tpu_custom_call.1} parent=31 // pred_check_branch
          %741 = sbr.rel (%p739) target = $region92
        $region91: #{tpu_custom_call.1} parent=31 // pred_region
          %p742 = scmp.lt.s32.totalorder %s35, 1
          %s743 = scalar_select %p742, %s35, 1
          %s744 = scalar_lea.vmem %s18, %s743
        $region92: #{tpu_custom_call.1} parent=31 // pred_fallthru
          _
        // Predicated region
        $region93: #{tpu_custom_call.1} parent=31 // pred_check
          %p745 = pneg %p553
        $region94: #{tpu_custom_call.1} parent=31 // pred_check_branch
          %747 = sbr.rel (%p745) target = $region96
        $region95: #{tpu_custom_call.1} parent=31 // pred_region
          %p748 = scmp.lt.s32.totalorder %s35, 1
          %s749 = scalar_select %p748, %s35, 1
          %s750 = scalar_lea.vmem %s19, %s749
        $region96: #{tpu_custom_call.1} parent=31 // pred_fallthru
          _
      $region32: #{tpu_custom_call.1} parent=5 // pred_fallthru
        _
      %p751 = scmp.le.s32.totalorder 1, %s27
      %p752 = scmp.lt.s32.totalorder %s27, 3
      %p753 = pnand %p751, %p752
      %p754 = pneg %p753
      // Predicated region
      $region97: #{tpu_custom_call.1} parent=5 // pred_check
        _
      $region98: #{tpu_custom_call.1} parent=5 // pred_check_branch
        %756 = sbr.rel (%p753) target = $region100
      $region99: #{tpu_custom_call.1} parent=5 // pred_region
        %s757 = ssub.s32 %s27, 1
        %s758 = smul.u32 2, %s36
        %p759 = scmp.lt.s32.totalorder %s758, 1
        %s760 = scalar_select %p759, %s758, 1
        %s761 = smul.addr %s760, 8
        %s762 = scalar_lea.vmem %s0, %s761
        %p763 = pneg %p65
        %p764 = pneg %p62
        %s765 = smul.u32 2, %s36
        %p766 = scmp.lt.s32.totalorder %s765, 1
        %s767 = scalar_select %p766, %s765, 1
        %s768 = smul.addr %s767, 8
        %s769 = scalar_lea.vmem %s1, %s768
        %p770 = pneg %p91
        %p771 = pneg %p88
        %s772 = smul.u32 2, %s36
        %p773 = scmp.lt.s32.totalorder %s772, 1
        %s774 = scalar_select %p773, %s772, 1
        %s775 = smul.addr %s774, 8
        %s776 = scalar_lea.vmem %s2, %s775
        %p777 = pneg %p117
        %p778 = pneg %p114
        %s779 = smul.u32 2, %s36
        %p780 = scmp.lt.s32.totalorder %s779, 1
        %s781 = scalar_select %p780, %s779, 1
        %s782 = smul.addr %s781, 8
        %s783 = scalar_lea.vmem %s3, %s782
        %p784 = pneg %p143
        %p785 = pneg %p140
        %p786 = scmp.lt.s32.totalorder %s37, 1
        %s787 = scalar_select %p786, %s37, 1
        %s788 = smul.addr %s787, 8
        %s789 = smul.addr %s788, 8
        %s790 = scalar_lea.vmem %s4, %s789
        %p791 = pneg %p169
        %p792 = pneg %p166
        %p793 = scmp.lt.s32.totalorder %s37, 1
        %s794 = scalar_select %p793, %s37, 1
        %s795 = smul.addr %s794, 2
        %s796 = scalar_lea.vmem %s5, %s795
        %p797 = pneg %p195
        %p798 = pneg %p192
        %p799 = scmp.lt.s32.totalorder %s37, 1
        %s800 = scalar_select %p799, %s37, 1
        %s801 = smul.addr %s800, 8
        %s802 = smul.addr %s801, 8
        %s803 = scalar_lea.vmem %s6, %s802
        %p804 = pneg %p221
        %p805 = pneg %p218
        %p806 = scmp.lt.s32.totalorder %s37, 1
        %s807 = scalar_select %p806, %s37, 1
        %s808 = smul.addr %s807, 2
        %s809 = scalar_lea.vmem %s7, %s808
        %p810 = pneg %p247
        %p811 = pneg %p244
        %p812 = scmp.lt.s32.totalorder %s37, 1
        %s813 = scalar_select %p812, %s37, 1
        %s814 = smul.addr %s813, 8
        %s815 = smul.addr %s814, 8
        %s816 = scalar_lea.vmem %s8, %s815
        %p817 = pneg %p273
        %p818 = pneg %p270
        %p819 = scmp.lt.s32.totalorder %s37, 1
        %s820 = scalar_select %p819, %s37, 1
        %s821 = smul.addr %s820, 2
        %s822 = scalar_lea.vmem %s9, %s821
        %p823 = pneg %p299
        %p824 = pneg %p296
        %p825 = scmp.lt.s32.totalorder %s37, 1
        %s826 = scalar_select %p825, %s37, 1
        %s827 = smul.addr %s826, 4
        %s828 = smul.addr %s827, 8
        %s829 = scalar_lea.vmem %s10, %s828
        %p830 = pneg %p325
        %p831 = pneg %p322
        %p832 = scmp.lt.s32.totalorder %s37, 1
        %s833 = scalar_select %p832, %s37, 1
        %s834 = scalar_lea.vmem %s11, %s833
        %p835 = pneg %p351
        %p836 = pneg %p348
        %p837 = scmp.lt.s32.totalorder %s37, 1
        %s838 = scalar_select %p837, %s37, 1
        %s839 = scalar_lea.vmem %s12, %s838
        %p840 = pneg %p377
        %p841 = pneg %p374
        %p842 = scmp.lt.s32.totalorder %s37, 1
        %s843 = scalar_select %p842, %s37, 1
        %s844 = scalar_lea.vmem %s13, %s843
        %p845 = pneg %p403
        %p846 = pneg %p400
        %p847 = scmp.lt.s32.totalorder %s37, 1
        %s848 = scalar_select %p847, %s37, 1
        %s849 = smul.addr %s848, 4
        %s850 = smul.addr %s849, 8
        %s851 = scalar_lea.vmem %s14, %s850
        %p852 = pneg %p429
        %p853 = pneg %p426
        %p854 = scmp.lt.s32.totalorder %s37, 1
        %s855 = scalar_select %p854, %s37, 1
        %s856 = scalar_lea.vmem %s15, %s855
        %p857 = pneg %p455
        %p858 = pneg %p452
        %p859 = scmp.lt.s32.totalorder %s37, 1
        %s860 = scalar_select %p859, %s37, 1
        %s861 = smul.addr %s860, 8
        %s862 = smul.addr %s861, 8
        %s863 = scalar_lea.vmem %s16, %s862
        %p864 = pneg %p481
        %p865 = pneg %p478
        %p866 = scmp.lt.s32.totalorder %s37, 1
        %s867 = scalar_select %p866, %s37, 1
        %s868 = scalar_lea.vmem %s17, %s867
        %p869 = pneg %p507
        %p870 = pneg %p504
        %p871 = scmp.lt.s32.totalorder %s37, 1
        %s872 = scalar_select %p871, %s37, 1
        %s873 = scalar_lea.vmem %s18, %s872
        %p874 = pneg %p533
        %p875 = pneg %p530
        %p876 = scmp.lt.s32.totalorder %s37, 1
        %s877 = scalar_select %p876, %s37, 1
        %s878 = scalar_lea.vmem %s19, %s877
        %p879 = pneg %p559
        %p880 = pneg %p556
        %p881 = pneg %p585
        %p882 = pneg %p582
        %s883 = smul.u32 2, %s36
        %p884 = scmp.lt.s32.totalorder %s883, 1
        %s885 = scalar_select %p884, %s883, 1
        %s886 = smul.addr %s885, 8
        %s887 = scalar_lea.vmem %s0, %s886
        %s888 = smul.u32 2, %s36
        %s889 = smul.u32 2, %s36
        %p890 = scmp.lt.s32.totalorder %s889, 1
        %s891 = scalar_select %p890, %s889, 1
        %s892 = smul.addr %s891, 8
        %s893 = scalar_lea.vmem %s1, %s892
        %s894 = smul.u32 2, %s36
        %s895 = smul.u32 2, %s36
        %p896 = scmp.lt.s32.totalorder %s895, 1
        %s897 = scalar_select %p896, %s895, 1
        %s898 = smul.addr %s897, 8
        %s899 = scalar_lea.vmem %s2, %s898
        %s900 = smul.u32 2, %s36
        %s901 = smul.u32 2, %s36
        %p902 = scmp.lt.s32.totalorder %s901, 1
        %s903 = scalar_select %p902, %s901, 1
        %s904 = smul.addr %s903, 8
        %s905 = scalar_lea.vmem %s3, %s904
        %s906 = smul.u32 2, %s36
        %p907 = scmp.lt.s32.totalorder %s37, 1
        %s908 = scalar_select %p907, %s37, 1
        %s909 = smul.addr %s908, 8
        %s910 = smul.addr %s909, 8
        %s911 = scalar_lea.vmem %s4, %s910
        %p912 = scmp.lt.s32.totalorder %s37, 1
        %s913 = scalar_select %p912, %s37, 1
        %s914 = smul.addr %s913, 2
        %s915 = scalar_lea.vmem %s5, %s914
        %p916 = scmp.lt.s32.totalorder %s37, 1
        %s917 = scalar_select %p916, %s37, 1
        %s918 = smul.addr %s917, 8
        %s919 = smul.addr %s918, 8
        %s920 = scalar_lea.vmem %s6, %s919
        %p921 = scmp.lt.s32.totalorder %s37, 1
        %s922 = scalar_select %p921, %s37, 1
        %s923 = smul.addr %s922, 2
        %s924 = scalar_lea.vmem %s7, %s923
        %p925 = scmp.lt.s32.totalorder %s37, 1
        %s926 = scalar_select %p925, %s37, 1
        %s927 = smul.addr %s926, 8
        %s928 = smul.addr %s927, 8
        %s929 = scalar_lea.vmem %s8, %s928
        %p930 = scmp.lt.s32.totalorder %s37, 1
        %s931 = scalar_select %p930, %s37, 1
        %s932 = smul.addr %s931, 2
        %s933 = scalar_lea.vmem %s9, %s932
        %p934 = scmp.lt.s32.totalorder %s37, 1
        %s935 = scalar_select %p934, %s37, 1
        %s936 = smul.addr %s935, 4
        %s937 = smul.addr %s936, 8
        %s938 = scalar_lea.vmem %s10, %s937
        %p939 = scmp.lt.s32.totalorder %s37, 1
        %s940 = scalar_select %p939, %s37, 1
        %s941 = scalar_lea.vmem %s11, %s940
        %p942 = scmp.lt.s32.totalorder %s37, 1
        %s943 = scalar_select %p942, %s37, 1
        %s944 = scalar_lea.vmem %s12, %s943
        %p945 = scmp.lt.s32.totalorder %s37, 1
        %s946 = scalar_select %p945, %s37, 1
        %s947 = scalar_lea.vmem %s13, %s946
        %p948 = scmp.lt.s32.totalorder %s37, 1
        %s949 = scalar_select %p948, %s37, 1
        %s950 = smul.addr %s949, 4
        %s951 = smul.addr %s950, 8
        %s952 = scalar_lea.vmem %s14, %s951
        %p953 = scmp.lt.s32.totalorder %s37, 1
        %s954 = scalar_select %p953, %s37, 1
        %s955 = scalar_lea.vmem %s15, %s954
        %p956 = scmp.lt.s32.totalorder %s37, 1
        %s957 = scalar_select %p956, %s37, 1
        %s958 = smul.addr %s957, 8
        %s959 = smul.addr %s958, 8
        %s960 = scalar_lea.vmem %s16, %s959
        %p961 = scmp.lt.s32.totalorder %s37, 1
        %s962 = scalar_select %p961, %s37, 1
        %s963 = scalar_lea.vmem %s17, %s962
        %p964 = scmp.lt.s32.totalorder %s37, 1
        %s965 = scalar_select %p964, %s37, 1
        %s966 = scalar_lea.vmem %s18, %s965
        %p967 = scmp.lt.s32.totalorder %s37, 1
        %s968 = scalar_select %p967, %s37, 1
        %s969 = scalar_lea.vmem %s19, %s968
        %s970 = smul.u32 2, %s36
        %p971 = scmp.eq.s32.totalorder %s37, 0
        // Predicated region
        $region101: #{tpu_custom_call.1} parent=99 // pred_check
          %p972 = pneg %p971
        $region102: #{tpu_custom_call.1} parent=99 // pred_check_branch
          %974 = sbr.rel (%p972) target = $region104
        $region103: #{tpu_custom_call.1} parent=99 // pred_region
          %v975 = vld [vmem:[%s887] sm:$0xff]
          %v976 = vld [vmem:[%s887 + $0x8] sm:$0xff]
          %vm977 = vcmask 261120
          %978 = vst.msk [vmem:[#allocation2] sm:$0xff] %vm977, %v975
          %979 = vst.msk [vmem:[#allocation2 + $0x8] sm:$0xff] %vm977, %v976
        $region104: #{tpu_custom_call.1} parent=99 // pred_fallthru
          _
        %v980 = vld [vmem:[#allocation2] sm:$0xff]
        %v981 = vld [vmem:[#allocation2 + $0x8] sm:$0xff]
        %v982 = vld [vmem:[%s893] sm:$0xff]
        %v983 = vld [vmem:[%s893 + $0x8] sm:$0xff]
        %v984 = vld [vmem:[%s899] sm:$0xff]
        %v985 = vld [vmem:[%s899 + $0x8] sm:$0xff]
        %v986 = vmul.f32 %v984, 0.25
        %v987 = vmul.f32 %v985, 0.25
        %v988 = vlaneseq
        %v989 = vshrl.u32 %v988, 7
        %v990 = vlaneseq
        %v991 = vand.u32 %v990, 127
        %vm992 = vcmp.lt.s32.totalorder %v991, %v989
        %v993 = vld [vmem:[%s911] sm:$0xff]
        %v994 = vld [vmem:[%s911 + $0x8] sm:$0xff]
        %v995 = vld [vmem:[%s911 + $0x10] sm:$0xff]
        %v996 = vld [vmem:[%s911 + $0x18] sm:$0xff]
        %v997 = vld [vmem:[%s915] sm:$0x1]
        %v999 = vperm.slane %v997, 0
        %vm1001 = vcmask 261120
        %v1003 = vsel %vm1001, %v980, 0
        %v1006 = vsel %vm1001, %v981, 0
        %1008 = vmatpush.msra.mxu0 0.0
        %1009 = vmatpush.msra.mxu0 0.0
        %1010 = vmatpush.msra.mxu0 0.0
        %1011 = vmatpush.msra.mxu0 0.0
        %1012 = vmatpush.msra.mxu0 0.0
        %1013 = vmatpush.msra.mxu0 0.0
        %1014 = vmatpush.msra.mxu0 0.0
        %1015 = vmatpush.msra.mxu0 0.0
        %1016 = vmatpush.msra.mxu0 0.0
        %1017 = vmatpush.msra.mxu0 0.0
        %1018 = vmatpush.msra.mxu0 0.0
        %1019 = vmatpush.msra.mxu0 0.0
        %1020 = vmatpush.msra.mxu0 %v996
        %1021 = vmatpush.msra.mxu0 %v995
        %1022 = vmatpush.msra.mxu0 %v994
        %1023 = vmatpush.msra.mxu0 %v993
        %1024 = vmatmul.f32.gmra.mxu0 %v1003
        %v1025 = vpop.f32.mrf.mxu0
        %v1026 = vadd.f32 %v999, %v1025
        %1027 = vmatmul.f32.gmra.mxu0 %v1006
        %v1028 = vpop.f32.mrf.mxu0
        %v1029 = vadd.f32 %v999, %v1028
        %1030 = vdwg.mxu0
        %v1031 = vld [vmem:[%s920] sm:$0xff]
        %v1032 = vld [vmem:[%s920 + $0x8] sm:$0xff]
        %v1033 = vld [vmem:[%s920 + $0x10] sm:$0xff]
        %v1034 = vld [vmem:[%s920 + $0x18] sm:$0xff]
        %v1035 = vld [vmem:[%s924] sm:$0x1]
        %v1037 = vperm.slane %v1035, 0
        %1039 = vmatpush.msra.mxu0 0.0
        %1040 = vmatpush.msra.mxu0 0.0
        %1041 = vmatpush.msra.mxu0 0.0
        %1042 = vmatpush.msra.mxu0 0.0
        %1043 = vmatpush.msra.mxu0 0.0
        %1044 = vmatpush.msra.mxu0 0.0
        %1045 = vmatpush.msra.mxu0 0.0
        %1046 = vmatpush.msra.mxu0 0.0
        %1047 = vmatpush.msra.mxu0 0.0
        %1048 = vmatpush.msra.mxu0 0.0
        %1049 = vmatpush.msra.mxu0 0.0
        %1050 = vmatpush.msra.mxu0 0.0
        %1051 = vmatpush.msra.mxu0 %v1034
        %1052 = vmatpush.msra.mxu0 %v1033
        %1053 = vmatpush.msra.mxu0 %v1032
        %1054 = vmatpush.msra.mxu0 %v1031
        %1055 = vmatmul.f32.gmra.mxu0 %v1003
        %v1056 = vpop.f32.mrf.mxu0
        %v1057 = vadd.f32 %v1037, %v1056
        %1058 = vmatmul.f32.gmra.mxu0 %v1006
        %v1059 = vpop.f32.mrf.mxu0
        %v1060 = vadd.f32 %v1037, %v1059
        %1061 = vdwg.mxu0
        %v1062 = vld [vmem:[%s929] sm:$0xff]
        %v1063 = vld [vmem:[%s929 + $0x8] sm:$0xff]
        %v1064 = vld [vmem:[%s929 + $0x10] sm:$0xff]
        %v1065 = vld [vmem:[%s929 + $0x18] sm:$0xff]
        %v1066 = vld [vmem:[%s933] sm:$0x1]
        %v1068 = vperm.slane %v1066, 0
        %v1071 = vsel %vm1001, %v982, 0
        %v1074 = vsel %vm1001, %v983, 0
        %1076 = vmatpush.msra.mxu0 0.0
        %1077 = vmatpush.msra.mxu0 0.0
        %1078 = vmatpush.msra.mxu0 0.0
        %1079 = vmatpush.msra.mxu0 0.0
        %1080 = vmatpush.msra.mxu0 0.0
        %1081 = vmatpush.msra.mxu0 0.0
        %1082 = vmatpush.msra.mxu0 0.0
        %1083 = vmatpush.msra.mxu0 0.0
        %1084 = vmatpush.msra.mxu0 0.0
        %1085 = vmatpush.msra.mxu0 0.0
        %1086 = vmatpush.msra.mxu0 0.0
        %1087 = vmatpush.msra.mxu0 0.0
        %1088 = vmatpush.msra.mxu0 %v1065
        %1089 = vmatpush.msra.mxu0 %v1064
        %1090 = vmatpush.msra.mxu0 %v1063
        %1091 = vmatpush.msra.mxu0 %v1062
        %1092 = vmatmul.f32.gmra.mxu0 %v1071
        %v1093 = vpop.f32.mrf.mxu0
        %v1094 = vadd.f32 %v1068, %v1093
        %1095 = vmatmul.f32.gmra.mxu0 %v1074
        %v1096 = vpop.f32.mrf.mxu0
        %v1097 = vadd.f32 %v1068, %v1096
        %1098 = vdwg.mxu0
        %1100 = vset.pattern.permute.xlu0 0
        %1101 = vperm.xlu0 %1100, %v986
        %v1102 = vpop.permute.xlu0 %1101
        %1105 = vset.pattern.permute.xlu0 0
        %1106 = vperm.xlu0 %1105, %v987
        %v1107 = vpop.permute.xlu0 %1106
        %v1109 = vmul.f32 %v1026, %v1102
        %v1110 = vmul.f32 %v1029, %v1107
        %vm1111 = vcmask 130048
        %v1113 = vsel %vm1111, %v1109, 0
        %v1116 = vsel %vm1111, %v1057, 0
        %1118 = vmatpush.xpose.msra.mxu0 0.0
        %1119 = vmatpush.xpose.msra.mxu0 0.0
        %1120 = vmatpush.xpose.msra.mxu0 0.0
        %1121 = vmatpush.xpose.msra.mxu0 0.0
        %1122 = vmatpush.xpose.msra.mxu0 0.0
        %1123 = vmatpush.xpose.msra.mxu0 0.0
        %1124 = vmatpush.xpose.msra.mxu0 0.0
        %1125 = vmatpush.xpose.msra.mxu0 0.0
        %1126 = vmatpush.xpose.msra.mxu0 0.0
        %1127 = vmatpush.xpose.msra.mxu0 0.0
        %1128 = vmatpush.xpose.msra.mxu0 0.0
        %1129 = vmatpush.xpose.msra.mxu0 0.0
        %1130 = vmatpush.xpose.msra.mxu0 0.0
        %1131 = vmatpush.xpose.msra.mxu0 0.0
        %1132 = vmatpush.xpose.msra.mxu0 0.0
        %1133 = vmatpush.xpose.msra.mxu0 %v1116
        %1134 = vmatmul.f32.gmra.mxu0 %v1113
        %v1135 = vpop.f32.mrf.mxu0
        %v1136 = vadd.f32 0.0, %v1135
        %1137 = vdwg.mxu0
        %v1139 = vsel %vm1111, %v1110, 0
        %v1142 = vsel %vm1111, %v1060, 0
        %1144 = vmatpush.xpose.msra.mxu0 0.0
        %1145 = vmatpush.xpose.msra.mxu0 0.0
        %1146 = vmatpush.xpose.msra.mxu0 0.0
        %1147 = vmatpush.xpose.msra.mxu0 0.0
        %1148 = vmatpush.xpose.msra.mxu0 0.0
        %1149 = vmatpush.xpose.msra.mxu0 0.0
        %1150 = vmatpush.xpose.msra.mxu0 0.0
        %1151 = vmatpush.xpose.msra.mxu0 0.0
        %1152 = vmatpush.xpose.msra.mxu0 0.0
        %1153 = vmatpush.xpose.msra.mxu0 0.0
        %1154 = vmatpush.xpose.msra.mxu0 0.0
        %1155 = vmatpush.xpose.msra.mxu0 0.0
        %1156 = vmatpush.xpose.msra.mxu0 0.0
        %1157 = vmatpush.xpose.msra.mxu0 0.0
        %1158 = vmatpush.xpose.msra.mxu0 0.0
        %1159 = vmatpush.xpose.msra.mxu0 %v1142
        %1160 = vmatmul.f32.gmra.mxu0 %v1139
        %v1161 = vpop.f32.mrf.mxu0
        %v1162 = vadd.f32 0.0, %v1161
        %1163 = vdwg.mxu0
        %v1164 = vsel %vm992, 1, 0
        %vm1165 = vcmp.eq.s32.totalorder %v1164, 1
        %v1166 = vsel %vm1165, %v1136, -1e+32
        %v1167 = vsel %vm1165, %v1162, -1e+32
        %vm1168 = vcmask 64512
        %v1169 = vsel %vm1168, %v1166, -inf
        %1170 = vmax.xlane.f32.xlu0 %v1169
        %v1171 = vpop.xlane.xlu0 %1170
        %v1172 = vsel %vm1168, %v1167, -inf
        %1173 = vmax.xlane.f32.xlu0 %v1172
        %v1174 = vpop.xlane.xlu0 %1173
        %v1175 = vsub.f32 %v1166, %v1171
        %v1176 = vsub.f32 %v1167, %v1174
        %v1177 = vmul.f32 %v1175, 1.442695
        %v1178 = vpow.pop %v1177
        %v1179 = vmul.f32 %v1176, 1.442695
        %v1180 = vpow.pop %v1179
        %v1181 = vsel %vm1168, %v1178, 0.0
        %1182 = vadd.xlane.f32.xlu0 %v1181
        %v1183 = vpop.xlane.xlu0 %1182
        %v1184 = vsel %vm1168, %v1180, 0.0
        %1185 = vadd.xlane.f32.xlu0 %v1184
        %v1186 = vpop.xlane.xlu0 %1185
        %v1187 = vrcp.pop %v1183
        %v1188 = vmul.f32 %v1183, %v1187
        %v1189 = vsub.f32 1.0, %v1188
        %v1190 = vmul.f32 %v1187, %v1189
        %v1191 = vadd.f32 %v1187, %v1190
        %vm1192 = vweird.f32 %v1183
        %vm1193 = vweird.f32 %v1187
        %vm1194 = vmor %vm1192, %vm1193
        %v1195 = vsel %vm1194, %v1187, %v1191
        %v1196 = vand.u32 2147483647, %v1183
        %vm1197 = vcmp.eq.f32.partialorder %v1196, 8.507059e+37
        %v1198 = vand.u32 %v1183, 2147483648
        %v1199 = vor.u32 1.1754944e-38, %v1198
        %v1200 = vsel %vm1197, %v1199, %v1195
        %v1201 = vrcp.pop %v1186
        %v1202 = vmul.f32 %v1186, %v1201
        %v1203 = vsub.f32 1.0, %v1202
        %v1204 = vmul.f32 %v1201, %v1203
        %v1205 = vadd.f32 %v1201, %v1204
        %vm1206 = vweird.f32 %v1186
        %vm1207 = vweird.f32 %v1201
        %vm1208 = vmor %vm1206, %vm1207
        %v1209 = vsel %vm1208, %v1201, %v1205
        %v1210 = vand.u32 2147483647, %v1186
        %vm1211 = vcmp.eq.f32.partialorder %v1210, 8.507059e+37
        %v1212 = vand.u32 %v1186, 2147483648
        %v1213 = vor.u32 1.1754944e-38, %v1212
        %v1214 = vsel %vm1211, %v1213, %v1209
        %v1215 = vmul.f32 %v1178, %v1200
        %v1216 = vmul.f32 %v1180, %v1214
        %v1218 = vsel %vm1168, %v1215, 0
        %1220 = vmatpush.msra.mxu0 0.0
        %1221 = vmatpush.msra.mxu0 0.0
        %1222 = vmatpush.msra.mxu0 0.0
        %1223 = vmatpush.msra.mxu0 0.0
        %1224 = vmatpush.msra.mxu0 0.0
        %1225 = vmatpush.msra.mxu0 0.0
        %1226 = vmatpush.msra.mxu0 0.0
        %1227 = vmatpush.msra.mxu0 0.0
        %1228 = vmatpush.msra.mxu0 0.0
        %1229 = vmatpush.msra.mxu0 0.0
        %1230 = vmatpush.msra.mxu0 0.0
        %1231 = vmatpush.msra.mxu0 0.0
        %1232 = vmatpush.msra.mxu0 0.0
        %1233 = vmatpush.msra.mxu0 0.0
        %1234 = vmatpush.msra.mxu0 0.0
        %1235 = vmatpush.msra.mxu0 %v1094
        %1236 = vmatmul.f32.gmra.mxu0 %v1218
        %v1237 = vpop.f32.mrf.mxu0
        %v1238 = vadd.f32 0.0, %v1237
        %1239 = vdwg.mxu0
        %v1241 = vsel %vm1168, %v1216, 0
        %1243 = vmatpush.msra.mxu0 0.0
        %1244 = vmatpush.msra.mxu0 0.0
        %1245 = vmatpush.msra.mxu0 0.0
        %1246 = vmatpush.msra.mxu0 0.0
        %1247 = vmatpush.msra.mxu0 0.0
        %1248 = vmatpush.msra.mxu0 0.0
        %1249 = vmatpush.msra.mxu0 0.0
        %1250 = vmatpush.msra.mxu0 0.0
        %1251 = vmatpush.msra.mxu0 0.0
        %1252 = vmatpush.msra.mxu0 0.0
        %1253 = vmatpush.msra.mxu0 0.0
        %1254 = vmatpush.msra.mxu0 0.0
        %1255 = vmatpush.msra.mxu0 0.0
        %1256 = vmatpush.msra.mxu0 0.0
        %1257 = vmatpush.msra.mxu0 0.0
        %1258 = vmatpush.msra.mxu0 %v1097
        %1259 = vmatmul.f32.gmra.mxu0 %v1241
        %v1260 = vpop.f32.mrf.mxu0
        %v1261 = vadd.f32 0.0, %v1260
        %1262 = vdwg.mxu0
        %v1263 = vld [vmem:[%s938] sm:$0xff]
        %v1264 = vld [vmem:[%s938 + $0x8] sm:$0xff]
        %s1265 = scalar_lea.vmem %s911, 32
        %v1266 = vld [vmem:[%s1265] sm:$0xff]
        %v1267 = vld [vmem:[%s1265 + $0x8] sm:$0xff]
        %v1268 = vld [vmem:[%s1265 + $0x10] sm:$0xff]
        %v1269 = vld [vmem:[%s1265 + $0x18] sm:$0xff]
        %s1270 = scalar_lea.vmem %s915, 1
        %v1271 = vld [vmem:[%s1270] sm:$0x1]
        %v1273 = vperm.slane %v1271, 0
        %1275 = vmatpush.msra.mxu0 0.0
        %1276 = vmatpush.msra.mxu0 0.0
        %1277 = vmatpush.msra.mxu0 0.0
        %1278 = vmatpush.msra.mxu0 0.0
        %1279 = vmatpush.msra.mxu0 0.0
        %1280 = vmatpush.msra.mxu0 0.0
        %1281 = vmatpush.msra.mxu0 0.0
        %1282 = vmatpush.msra.mxu0 0.0
        %1283 = vmatpush.msra.mxu0 0.0
        %1284 = vmatpush.msra.mxu0 0.0
        %1285 = vmatpush.msra.mxu0 0.0
        %1286 = vmatpush.msra.mxu0 0.0
        %1287 = vmatpush.msra.mxu0 %v1269
        %1288 = vmatpush.msra.mxu0 %v1268
        %1289 = vmatpush.msra.mxu0 %v1267
        %1290 = vmatpush.msra.mxu0 %v1266
        %1291 = vmatmul.f32.gmra.mxu0 %v1003
        %v1292 = vpop.f32.mrf.mxu0
        %v1293 = vadd.f32 %v1273, %v1292
        %1294 = vmatmul.f32.gmra.mxu0 %v1006
        %v1295 = vpop.f32.mrf.mxu0
        %v1296 = vadd.f32 %v1273, %v1295
        %1297 = vdwg.mxu0
        %s1298 = scalar_lea.vmem %s920, 32
        %v1299 = vld [vmem:[%s1298] sm:$0xff]
        %v1300 = vld [vmem:[%s1298 + $0x8] sm:$0xff]
        %v1301 = vld [vmem:[%s1298 + $0x10] sm:$0xff]
        %v1302 = vld [vmem:[%s1298 + $0x18] sm:$0xff]
        %s1303 = scalar_lea.vmem %s924, 1
        %v1304 = vld [vmem:[%s1303] sm:$0x1]
        %v1306 = vperm.slane %v1304, 0
        %1308 = vmatpush.msra.mxu0 0.0
        %1309 = vmatpush.msra.mxu0 0.0
        %1310 = vmatpush.msra.mxu0 0.0
        %1311 = vmatpush.msra.mxu0 0.0
        %1312 = vmatpush.msra.mxu0 0.0
        %1313 = vmatpush.msra.mxu0 0.0
        %1314 = vmatpush.msra.mxu0 0.0
        %1315 = vmatpush.msra.mxu0 0.0
        %1316 = vmatpush.msra.mxu0 0.0
        %1317 = vmatpush.msra.mxu0 0.0
        %1318 = vmatpush.msra.mxu0 0.0
        %1319 = vmatpush.msra.mxu0 0.0
        %1320 = vmatpush.msra.mxu0 %v1302
        %1321 = vmatpush.msra.mxu0 %v1301
        %1322 = vmatpush.msra.mxu0 %v1300
        %1323 = vmatpush.msra.mxu0 %v1299
        %1324 = vmatmul.f32.gmra.mxu0 %v1003
        %v1325 = vpop.f32.mrf.mxu0
        %v1326 = vadd.f32 %v1306, %v1325
        %1327 = vmatmul.f32.gmra.mxu0 %v1006
        %v1328 = vpop.f32.mrf.mxu0
        %v1329 = vadd.f32 %v1306, %v1328
        %1330 = vdwg.mxu0
        %s1331 = scalar_lea.vmem %s929, 32
        %v1332 = vld [vmem:[%s1331] sm:$0xff]
        %v1333 = vld [vmem:[%s1331 + $0x8] sm:$0xff]
        %v1334 = vld [vmem:[%s1331 + $0x10] sm:$0xff]
        %v1335 = vld [vmem:[%s1331 + $0x18] sm:$0xff]
        %s1336 = scalar_lea.vmem %s933, 1
        %v1337 = vld [vmem:[%s1336] sm:$0x1]
        %v1339 = vperm.slane %v1337, 0
        %1341 = vmatpush.msra.mxu0 0.0
        %1342 = vmatpush.msra.mxu0 0.0
        %1343 = vmatpush.msra.mxu0 0.0
        %1344 = vmatpush.msra.mxu0 0.0
        %1345 = vmatpush.msra.mxu0 0.0
        %1346 = vmatpush.msra.mxu0 0.0
        %1347 = vmatpush.msra.mxu0 0.0
        %1348 = vmatpush.msra.mxu0 0.0
        %1349 = vmatpush.msra.mxu0 0.0
        %1350 = vmatpush.msra.mxu0 0.0
        %1351 = vmatpush.msra.mxu0 0.0
        %1352 = vmatpush.msra.mxu0 0.0
        %1353 = vmatpush.msra.mxu0 %v1335
        %1354 = vmatpush.msra.mxu0 %v1334
        %1355 = vmatpush.msra.mxu0 %v1333
        %1356 = vmatpush.msra.mxu0 %v1332
        %1357 = vmatmul.f32.gmra.mxu0 %v1071
        %v1358 = vpop.f32.mrf.mxu0
        %v1359 = vadd.f32 %v1339, %v1358
        %1360 = vmatmul.f32.gmra.mxu0 %v1074
        %v1361 = vpop.f32.mrf.mxu0
        %v1362 = vadd.f32 %v1339, %v1361
        %1363 = vdwg.mxu0
        %v1364 = vmul.f32 %v1293, %v1102
        %v1365 = vmul.f32 %v1296, %v1107
        %v1367 = vsel %vm1111, %v1364, 0
        %v1370 = vsel %vm1111, %v1326, 0
        %1372 = vmatpush.xpose.msra.mxu0 0.0
        %1373 = vmatpush.xpose.msra.mxu0 0.0
        %1374 = vmatpush.xpose.msra.mxu0 0.0
        %1375 = vmatpush.xpose.msra.mxu0 0.0
        %1376 = vmatpush.xpose.msra.mxu0 0.0
        %1377 = vmatpush.xpose.msra.mxu0 0.0
        %1378 = vmatpush.xpose.msra.mxu0 0.0
        %1379 = vmatpush.xpose.msra.mxu0 0.0
        %1380 = vmatpush.xpose.msra.mxu0 0.0
        %1381 = vmatpush.xpose.msra.mxu0 0.0
        %1382 = vmatpush.xpose.msra.mxu0 0.0
        %1383 = vmatpush.xpose.msra.mxu0 0.0
        %1384 = vmatpush.xpose.msra.mxu0 0.0
        %1385 = vmatpush.xpose.msra.mxu0 0.0
        %1386 = vmatpush.xpose.msra.mxu0 0.0
        %1387 = vmatpush.xpose.msra.mxu0 %v1370
        %1388 = vmatmul.f32.gmra.mxu0 %v1367
        %v1389 = vpop.f32.mrf.mxu0
        %v1390 = vadd.f32 0.0, %v1389
        %1391 = vdwg.mxu0
        %v1393 = vsel %vm1111, %v1365, 0
        %v1396 = vsel %vm1111, %v1329, 0
        %1398 = vmatpush.xpose.msra.mxu0 0.0
        %1399 = vmatpush.xpose.msra.mxu0 0.0
        %1400 = vmatpush.xpose.msra.mxu0 0.0
        %1401 = vmatpush.xpose.msra.mxu0 0.0
        %1402 = vmatpush.xpose.msra.mxu0 0.0
        %1403 = vmatpush.xpose.msra.mxu0 0.0
        %1404 = vmatpush.xpose.msra.mxu0 0.0
        %1405 = vmatpush.xpose.msra.mxu0 0.0
        %1406 = vmatpush.xpose.msra.mxu0 0.0
        %1407 = vmatpush.xpose.msra.mxu0 0.0
        %1408 = vmatpush.xpose.msra.mxu0 0.0
        %1409 = vmatpush.xpose.msra.mxu0 0.0
        %1410 = vmatpush.xpose.msra.mxu0 0.0
        %1411 = vmatpush.xpose.msra.mxu0 0.0
        %1412 = vmatpush.xpose.msra.mxu0 0.0
        %1413 = vmatpush.xpose.msra.mxu0 %v1396
        %1414 = vmatmul.f32.gmra.mxu0 %v1393
        %v1415 = vpop.f32.mrf.mxu0
        %v1416 = vadd.f32 0.0, %v1415
        %1417 = vdwg.mxu0
        %v1418 = vsel %vm1165, %v1390, -1e+32
        %v1419 = vsel %vm1165, %v1416, -1e+32
        %v1420 = vsel %vm1168, %v1418, -inf
        %1421 = vmax.xlane.f32.xlu0 %v1420
        %v1422 = vpop.xlane.xlu0 %1421
        %v1423 = vsel %vm1168, %v1419, -inf
        %1424 = vmax.xlane.f32.xlu0 %v1423
        %v1425 = vpop.xlane.xlu0 %1424
        %v1426 = vsub.f32 %v1418, %v1422
        %v1427 = vsub.f32 %v1419, %v1425
        %v1428 = vmul.f32 %v1426, 1.442695
        %v1429 = vpow.pop %v1428
        %v1430 = vmul.f32 %v1427, 1.442695
        %v1431 = vpow.pop %v1430
        %v1432 = vsel %vm1168, %v1429, 0.0
        %1433 = vadd.xlane.f32.xlu0 %v1432
        %v1434 = vpop.xlane.xlu0 %1433
        %v1435 = vsel %vm1168, %v1431, 0.0
        %1436 = vadd.xlane.f32.xlu0 %v1435
        %v1437 = vpop.xlane.xlu0 %1436
        %v1438 = vrcp.pop %v1434
        %v1439 = vmul.f32 %v1434, %v1438
        %v1440 = vsub.f32 1.0, %v1439
        %v1441 = vmul.f32 %v1438, %v1440
        %v1442 = vadd.f32 %v1438, %v1441
        %vm1443 = vweird.f32 %v1434
        %vm1444 = vweird.f32 %v1438
        %vm1445 = vmor %vm1443, %vm1444
        %v1446 = vsel %vm1445, %v1438, %v1442
        %v1447 = vand.u32 2147483647, %v1434
        %vm1448 = vcmp.eq.f32.partialorder %v1447, 8.507059e+37
        %v1449 = vand.u32 %v1434, 2147483648
        %v1450 = vor.u32 1.1754944e-38, %v1449
        %v1451 = vsel %vm1448, %v1450, %v1446
        %v1452 = vrcp.pop %v1437
        %v1453 = vmul.f32 %v1437, %v1452
        %v1454 = vsub.f32 1.0, %v1453
        %v1455 = vmul.f32 %v1452, %v1454
        %v1456 = vadd.f32 %v1452, %v1455
        %vm1457 = vweird.f32 %v1437
        %vm1458 = vweird.f32 %v1452
        %vm1459 = vmor %vm1457, %vm1458
        %v1460 = vsel %vm1459, %v1452, %v1456
        %v1461 = vand.u32 2147483647, %v1437
        %vm1462 = vcmp.eq.f32.partialorder %v1461, 8.507059e+37
        %v1463 = vand.u32 %v1437, 2147483648
        %v1464 = vor.u32 1.1754944e-38, %v1463
        %v1465 = vsel %vm1462, %v1464, %v1460
        %v1466 = vmul.f32 %v1429, %v1451
        %v1467 = vmul.f32 %v1431, %v1465
        %v1469 = vsel %vm1168, %v1466, 0
        %1471 = vmatpush.msra.mxu0 0.0
        %1472 = vmatpush.msra.mxu0 0.0
        %1473 = vmatpush.msra.mxu0 0.0
        %1474 = vmatpush.msra.mxu0 0.0
        %1475 = vmatpush.msra.mxu0 0.0
        %1476 = vmatpush.msra.mxu0 0.0
        %1477 = vmatpush.msra.mxu0 0.0
        %1478 = vmatpush.msra.mxu0 0.0
        %1479 = vmatpush.msra.mxu0 0.0
        %1480 = vmatpush.msra.mxu0 0.0
        %1481 = vmatpush.msra.mxu0 0.0
        %1482 = vmatpush.msra.mxu0 0.0
        %1483 = vmatpush.msra.mxu0 0.0
        %1484 = vmatpush.msra.mxu0 0.0
        %1485 = vmatpush.msra.mxu0 0.0
        %1486 = vmatpush.msra.mxu0 %v1359
        %1487 = vmatmul.f32.gmra.mxu0 %v1469
        %v1488 = vpop.f32.mrf.mxu0
        %v1489 = vadd.f32 0.0, %v1488
        %1490 = vdwg.mxu0
        %v1492 = vsel %vm1168, %v1467, 0
        %1494 = vmatpush.msra.mxu0 0.0
        %1495 = vmatpush.msra.mxu0 0.0
        %1496 = vmatpush.msra.mxu0 0.0
        %1497 = vmatpush.msra.mxu0 0.0
        %1498 = vmatpush.msra.mxu0 0.0
        %1499 = vmatpush.msra.mxu0 0.0
        %1500 = vmatpush.msra.mxu0 0.0
        %1501 = vmatpush.msra.mxu0 0.0
        %1502 = vmatpush.msra.mxu0 0.0
        %1503 = vmatpush.msra.mxu0 0.0
        %1504 = vmatpush.msra.mxu0 0.0
        %1505 = vmatpush.msra.mxu0 0.0
        %1506 = vmatpush.msra.mxu0 0.0
        %1507 = vmatpush.msra.mxu0 0.0
        %1508 = vmatpush.msra.mxu0 0.0
        %1509 = vmatpush.msra.mxu0 %v1362
        %1510 = vmatmul.f32.gmra.mxu0 %v1492
        %v1511 = vpop.f32.mrf.mxu0
        %v1512 = vadd.f32 0.0, %v1511
        %1513 = vdwg.mxu0
        %s1514 = scalar_lea.vmem %s938, 16
        %v1515 = vld [vmem:[%s1514] sm:$0xff]
        %v1516 = vld [vmem:[%s1514 + $0x8] sm:$0xff]
        %v1518 = vsel %vm1111, %v1489, 0
        %v1521 = vsel %vm1111, %v1512, 0
        %1523 = vmatpush.msra.mxu0 0.0
        %1524 = vmatpush.msra.mxu0 0.0
        %1525 = vmatpush.msra.mxu0 0.0
        %1526 = vmatpush.msra.mxu0 0.0
        %1527 = vmatpush.msra.mxu0 0.0
        %1528 = vmatpush.msra.mxu0 0.0
        %1529 = vmatpush.msra.mxu0 0.0
        %1530 = vmatpush.msra.mxu0 0.0
        %1531 = vmatpush.msra.mxu0 0.0
        %1532 = vmatpush.msra.mxu0 0.0
        %1533 = vmatpush.msra.mxu0 0.0
        %1534 = vmatpush.msra.mxu0 0.0
        %1535 = vmatpush.msra.mxu0 0.0
        %1536 = vmatpush.msra.mxu0 0.0
        %1537 = vmatpush.msra.mxu0 %v1516
        %1538 = vmatpush.msra.mxu0 %v1515
        %1539 = vmatmul.f32.gmra.mxu0 %v1518
        %v1540 = vpop.f32.mrf.mxu0
        %v1541 = vadd.f32 0.0, %v1540
        %1542 = vmatmul.f32.gmra.mxu0 %v1521
        %v1543 = vpop.f32.mrf.mxu0
        %v1544 = vadd.f32 0.0, %v1543
        %1545 = vdwg.mxu0
        %v1547 = vsel %vm1111, %v1238, 0
        %v1550 = vsel %vm1111, %v1261, 0
        %1552 = vmatpush.msra.mxu0 0.0
        %1553 = vmatpush.msra.mxu0 0.0
        %1554 = vmatpush.msra.mxu0 0.0
        %1555 = vmatpush.msra.mxu0 0.0
        %1556 = vmatpush.msra.mxu0 0.0
        %1557 = vmatpush.msra.mxu0 0.0
        %1558 = vmatpush.msra.mxu0 0.0
        %1559 = vmatpush.msra.mxu0 0.0
        %1560 = vmatpush.msra.mxu0 0.0
        %1561 = vmatpush.msra.mxu0 0.0
        %1562 = vmatpush.msra.mxu0 0.0
        %1563 = vmatpush.msra.mxu0 0.0
        %1564 = vmatpush.msra.mxu0 0.0
        %1565 = vmatpush.msra.mxu0 0.0
        %1566 = vmatpush.msra.mxu0 %v1264
        %1567 = vmatpush.msra.mxu0 %v1263
        %1568 = vmatmul.f32.gmra.mxu0 %v1547
        %v1569 = vpop.f32.mrf.mxu0
        %v1570 = vadd.f32 %v1541, %v1569
        %1571 = vmatmul.f32.gmra.mxu0 %v1550
        %v1572 = vpop.f32.mrf.mxu0
        %v1573 = vadd.f32 %v1544, %v1572
        %1574 = vdwg.mxu0
        %v1575 = vld [vmem:[%s905] sm:$0xff]
        %v1576 = vld [vmem:[%s905 + $0x8] sm:$0xff]
        %1578 = vset.pattern.permute.xlu0 0
        %1579 = vperm.xlu0 %1578, %v1575
        %v1580 = vpop.permute.xlu0 %1579
        %1583 = vset.pattern.permute.xlu0 0
        %1584 = vperm.xlu0 %1583, %v1576
        %v1585 = vpop.permute.xlu0 %1584
        %v1587 = vmul.f32 %v1570, %v1580
        %v1588 = vmul.f32 %v1573, %v1585
        %v1589 = vld [vmem:[%s941] sm:$0x1]
        %v1591 = vperm.slane %v1589, 0
        %v1593 = vadd.f32 %v1587, %v1591
        %v1594 = vadd.f32 %v1588, %v1591
        %v1595 = vadd.f32 %v980, %v1593
        %v1596 = vadd.f32 %v981, %v1594
        %v1597 = vsel %vm1001, %v1595, 0.0
        %1598 = vadd.xlane.f32.xlu0 %v1597
        %v1599 = vpop.xlane.xlu0 %1598
        %v1600 = vsel %vm1001, %v1596, 0.0
        %1601 = vadd.xlane.f32.xlu0 %v1600
        %v1602 = vpop.xlane.xlu0 %1601
        %v1603 = vrcp.pop 32.0
        %v1604 = vmul.f32 32.0, %v1603
        %v1605 = vsub.f32 1.0, %v1604
        %v1606 = vmul.f32 %v1603, %v1605
        %v1607 = vadd.f32 %v1603, %v1606
        %vm1608 = vweird.f32 %v1603
        %v1609 = vsel %vm1608, %v1603, %v1607
        %v1610 = vmul.f32 %v1599, %v1609
        %v1611 = vmul.f32 %v1602, %v1609
        %v1612 = vsub.f32 %v1595, %v1610
        %v1613 = vsub.f32 %v1596, %v1611
        %v1614 = vmul.f32 %v1612, %v1612
        %v1615 = vmul.f32 %v1613, %v1613
        %v1616 = vsel %vm1001, %v1614, 0.0
        %1617 = vadd.xlane.f32.xlu0 %v1616
        %v1618 = vpop.xlane.xlu0 %1617
        %v1619 = vsel %vm1001, %v1615, 0.0
        %1620 = vadd.xlane.f32.xlu0 %v1619
        %v1621 = vpop.xlane.xlu0 %1620
        %v1622 = vmul.f32 %v1618, %v1609
        %v1623 = vmul.f32 %v1621, %v1609
        %v1624 = vadd.f32 %v1622, 1e-05
        %v1625 = vadd.f32 %v1623, 1e-05
        %v1626 = vrsqrt.pop %v1624
        %v1627 = vmul.f32 %v1626, %v1624
        %v1628 = vmul.f32 %v1627, %v1626
        %v1629 = vmul.f32 0.5, %v1628
        %v1630 = vsub.f32 1.5, %v1629
        %v1631 = vmul.f32 %v1626, %v1630
        %vm1632 = vweird.f32 %v1624
        %vm1633 = vweird.f32 %v1626
        %vm1634 = vmor %vm1632, %vm1633
        %v1635 = vsel %vm1634, %v1626, %v1631
        %v1636 = vrsqrt.pop %v1625
        %v1637 = vmul.f32 %v1636, %v1625
        %v1638 = vmul.f32 %v1637, %v1636
        %v1639 = vmul.f32 0.5, %v1638
        %v1640 = vsub.f32 1.5, %v1639
        %v1641 = vmul.f32 %v1636, %v1640
        %vm1642 = vweird.f32 %v1625
        %vm1643 = vweird.f32 %v1636
        %vm1644 = vmor %vm1642, %vm1643
        %v1645 = vsel %vm1644, %v1636, %v1641
        %v1646 = vmul.f32 %v1612, %v1635
        %v1647 = vmul.f32 %v1613, %v1645
        %v1648 = vld [vmem:[%s944] sm:$0x1]
        %v1650 = vperm.slane %v1648, 0
        %v1652 = vmul.f32 %v1646, %v1650
        %v1653 = vmul.f32 %v1647, %v1650
        %v1654 = vld [vmem:[%s947] sm:$0x1]
        %v1656 = vperm.slane %v1654, 0
        %v1658 = vadd.f32 %v1652, %v1656
        %v1659 = vadd.f32 %v1653, %v1656
        %v1660 = vld [vmem:[%s952] sm:$0xff]
        %v1661 = vld [vmem:[%s952 + $0x8] sm:$0xff]
        %v1662 = vld [vmem:[%s952 + $0x10] sm:$0xff]
        %v1663 = vld [vmem:[%s952 + $0x18] sm:$0xff]
        %v1664 = vld [vmem:[%s955] sm:$0x1]
        %v1666 = vperm.slane %v1664, 0
        %v1669 = vsel %vm1001, %v1658, 0
        %v1672 = vsel %vm1001, %v1659, 0
        %1674 = vmatpush.msra.mxu0 0.0
        %1675 = vmatpush.msra.mxu0 0.0
        %1676 = vmatpush.msra.mxu0 0.0
        %1677 = vmatpush.msra.mxu0 0.0
        %1678 = vmatpush.msra.mxu0 0.0
        %1679 = vmatpush.msra.mxu0 0.0
        %1680 = vmatpush.msra.mxu0 0.0
        %1681 = vmatpush.msra.mxu0 0.0
        %1682 = vmatpush.msra.mxu0 0.0
        %1683 = vmatpush.msra.mxu0 0.0
        %1684 = vmatpush.msra.mxu0 0.0
        %1685 = vmatpush.msra.mxu0 0.0
        %1686 = vmatpush.msra.mxu0 %v1663
        %1687 = vmatpush.msra.mxu0 %v1662
        %1688 = vmatpush.msra.mxu0 %v1661
        %1689 = vmatpush.msra.mxu0 %v1660
        %1690 = vmatmul.f32.gmra.mxu0 %v1669
        %v1691 = vpop.f32.mrf.mxu0
        %v1692 = vadd.f32 %v1666, %v1691
        %1693 = vmatmul.f32.gmra.mxu0 %v1672
        %v1694 = vpop.f32.mrf.mxu0
        %v1695 = vadd.f32 %v1666, %v1694
        %1696 = vdwg.mxu0
        %v1697 = vmax.f32 %v1692, 0.0
        %v1698 = vmax.f32 %v1695, 0.0
        %v1699 = vld [vmem:[%s960] sm:$0xff]
        %v1700 = vld [vmem:[%s960 + $0x8] sm:$0xff]
        %v1701 = vld [vmem:[%s960 + $0x10] sm:$0xff]
        %v1702 = vld [vmem:[%s960 + $0x18] sm:$0xff]
        %v1703 = vld [vmem:[%s960 + $0x20] sm:$0xff]
        %v1704 = vld [vmem:[%s960 + $0x28] sm:$0xff]
        %v1705 = vld [vmem:[%s960 + $0x30] sm:$0xff]
        %v1706 = vld [vmem:[%s960 + $0x38] sm:$0xff]
        %v1707 = vld [vmem:[%s963] sm:$0x1]
        %v1709 = vperm.slane %v1707, 0
        %vm1711 = vcmask 523264
        %v1713 = vsel %vm1711, %v1697, 0
        %v1716 = vsel %vm1711, %v1698, 0
        %1718 = vmatpush.msra.mxu0 0.0
        %1719 = vmatpush.msra.mxu0 0.0
        %1720 = vmatpush.msra.mxu0 0.0
        %1721 = vmatpush.msra.mxu0 0.0
        %1722 = vmatpush.msra.mxu0 0.0
        %1723 = vmatpush.msra.mxu0 0.0
        %1724 = vmatpush.msra.mxu0 0.0
        %1725 = vmatpush.msra.mxu0 0.0
        %1726 = vmatpush.msra.mxu0 %v1706
        %1727 = vmatpush.msra.mxu0 %v1705
        %1728 = vmatpush.msra.mxu0 %v1704
        %1729 = vmatpush.msra.mxu0 %v1703
        %1730 = vmatpush.msra.mxu0 %v1702
        %1731 = vmatpush.msra.mxu0 %v1701
        %1732 = vmatpush.msra.mxu0 %v1700
        %1733 = vmatpush.msra.mxu0 %v1699
        %1734 = vmatmul.f32.gmra.mxu0 %v1713
        %v1735 = vpop.f32.mrf.mxu0
        %v1736 = vadd.f32 %v1709, %v1735
        %1737 = vmatmul.f32.gmra.mxu0 %v1716
        %v1738 = vpop.f32.mrf.mxu0
        %v1739 = vadd.f32 %v1709, %v1738
        %1740 = vdwg.mxu0
        %v1741 = vadd.f32 %v1658, %v1736
        %v1742 = vadd.f32 %v1659, %v1739
        %v1743 = vsel %vm1001, %v1741, 0.0
        %1744 = vadd.xlane.f32.xlu0 %v1743
        %v1745 = vpop.xlane.xlu0 %1744
        %v1746 = vsel %vm1001, %v1742, 0.0
        %1747 = vadd.xlane.f32.xlu0 %v1746
        %v1748 = vpop.xlane.xlu0 %1747
        %v1749 = vmul.f32 %v1745, %v1609
        %v1750 = vmul.f32 %v1748, %v1609
        %v1751 = vsub.f32 %v1741, %v1749
        %v1752 = vsub.f32 %v1742, %v1750
        %v1753 = vmul.f32 %v1751, %v1751
        %v1754 = vmul.f32 %v1752, %v1752
        %v1755 = vsel %vm1001, %v1753, 0.0
        %1756 = vadd.xlane.f32.xlu0 %v1755
        %v1757 = vpop.xlane.xlu0 %1756
        %v1758 = vsel %vm1001, %v1754, 0.0
        %1759 = vadd.xlane.f32.xlu0 %v1758
        %v1760 = vpop.xlane.xlu0 %1759
        %v1761 = vmul.f32 %v1757, %v1609
        %v1762 = vmul.f32 %v1760, %v1609
        %v1763 = vadd.f32 %v1761, 1e-05
        %v1764 = vadd.f32 %v1762, 1e-05
        %v1765 = vrsqrt.pop %v1763
        %v1766 = vmul.f32 %v1765, %v1763
        %v1767 = vmul.f32 %v1766, %v1765
        %v1768 = vmul.f32 0.5, %v1767
        %v1769 = vsub.f32 1.5, %v1768
        %v1770 = vmul.f32 %v1765, %v1769
        %vm1771 = vweird.f32 %v1763
        %vm1772 = vweird.f32 %v1765
        %vm1773 = vmor %vm1771, %vm1772
        %v1774 = vsel %vm1773, %v1765, %v1770
        %v1775 = vrsqrt.pop %v1764
        %v1776 = vmul.f32 %v1775, %v1764
        %v1777 = vmul.f32 %v1776, %v1775
        %v1778 = vmul.f32 0.5, %v1777
        %v1779 = vsub.f32 1.5, %v1778
        %v1780 = vmul.f32 %v1775, %v1779
        %vm1781 = vweird.f32 %v1764
        %vm1782 = vweird.f32 %v1775
        %vm1783 = vmor %vm1781, %vm1782
        %v1784 = vsel %vm1783, %v1775, %v1780
        %v1785 = vmul.f32 %v1751, %v1774
        %v1786 = vmul.f32 %v1752, %v1784
        %v1787 = vld [vmem:[%s966] sm:$0x1]
        %v1789 = vperm.slane %v1787, 0
        %v1791 = vmul.f32 %v1785, %v1789
        %v1792 = vmul.f32 %v1786, %v1789
        %v1793 = vld [vmem:[%s969] sm:$0x1]
        %v1795 = vperm.slane %v1793, 0
        %v1797 = vadd.f32 %v1791, %v1795
        %v1798 = vadd.f32 %v1792, %v1795
        %1799 = vst.msk [vmem:[#allocation2] sm:$0xff] %vm1001, %v1797
        %1800 = vst.msk [vmem:[#allocation2 + $0x8] sm:$0xff] %vm1001, %v1798
        %1801 = vst.msk [vmem:[#allocation3] sm:$0xff] %vm1001, %v1797
        %1802 = vst.msk [vmem:[#allocation3 + $0x8] sm:$0xff] %vm1001, %v1798
        // Predicated region
        $region105: #{tpu_custom_call.1} parent=99 // pred_check
          %p1803 = pneg %p582
        $region106: #{tpu_custom_call.1} parent=99 // pred_check_branch
          %1805 = sbr.rel (%p1803) target = $region108
        $region107: #{tpu_custom_call.1} parent=99 // pred_region
          %s1806 = smul.u32 2, %s36
          %1808 = vsyncadd [#allocation4], 0
          %s1809 = smul.addr %s1806, 8
          %s1810 = scalar_lea.hbm %s20, %s1809
          %s1811 = sshll.u32 [#allocation3], 4
          %s1812 = int_to_ptr.vmem [resolvable:$true] %s1811
          %s1813 = sshll.u32 %s1810, 4
          %s1814 = int_to_ptr.hbm [resolvable:$true] %s1813
          %1819 = dma.vmem_to_hbm [thread:$0]  %s1812, 256, %s1814, [#allocation4], 128, 128, 8
        $region108: #{tpu_custom_call.1} parent=99 // pred_fallthru
          _
        // Predicated region
        $region109: #{tpu_custom_call.1} parent=99 // pred_check
          %p1820 = pneg %p582
        $region110: #{tpu_custom_call.1} parent=99 // pred_check_branch
          %1822 = sbr.rel (%p1820) target = $region112
        $region111: #{tpu_custom_call.1} parent=99 // pred_region
          %1824 = dma.done [#allocation4], 256
        $region112: #{tpu_custom_call.1} parent=99 // pred_fallthru
          _
      $region100: #{tpu_custom_call.1} parent=5 // pred_fallthru
        _
      %p1825 = scmp.le.s32.totalorder 2, %s27
      // Predicated region
      $region113: #{tpu_custom_call.1} parent=5 // pred_check
        %p1826 = pneg %p1825
      $region114: #{tpu_custom_call.1} parent=5 // pred_check_branch
        %1828 = sbr.rel (%p1826) target = $region116
      $region115: #{tpu_custom_call.1} parent=5 // pred_region
        %s1829 = ssub.s32 %s27, 2
      $region116: #{tpu_custom_call.1} parent=5 // pred_fallthru
        _
    $region6: #{tpu_custom_call.1} parent=1 // loop_footer
      %s31 = sadd.s32 1, %s27
    $region7: #{tpu_custom_call.1} parent=1 // loop_footer_branch
      %26 = sbr.rel target = $region3
    $region8: #{tpu_custom_call.1} parent=1 // loop_exit
      _
    %1830 = vsyncpa [#allocation4], 1
    %s1831 = scalar_lea.sflag [#allocation4], 1
    %1832 = vsyncpa %s1831, 1

</llo_original>
